<compile_context>
chip_gen: v7x
topology: tpu7x:2x2x1
jax: 0.10.0
libtpu: 0.0.40
codegen_flags: <defaults>
</compile_context>

<pallas_src>
import math
import functools

import jax
import jax.numpy as jnp
from jax.experimental import pallas as pl
from jax.experimental.pallas import tpu as pltpu


# ----------------------------- in-kernel helpers -----------------------------

def _layer_norm(v, g, b, eps=1e-5):
    mu = jnp.mean(v, axis=-1, keepdims=True)
    d = v - mu
    var = jnp.mean(d * d, axis=-1, keepdims=True)
    return d * jax.lax.rsqrt(var + eps) * g + b


def _gelu(x):
    # TODO(synk): ESM uses exact erf-GELU; tanh approximation keeps lowering simple.
    c = jnp.float32(0.7978845608028654)
    return 0.5 * x * (1.0 + jnp.tanh(c * (x + 0.044715 * x * x * x)))


def _mm(a, w):
    # MXU matmul: activations cast to the (bf16) weight dtype, f32 accumulation.
    return jnp.dot(a.astype(w.dtype), w, preferred_element_type=jnp.float32)


# --------------------------- fused encoder kernel ----------------------------

def encoder_kernel(tok_ref, emb_ref,
                   ln1g_ref, ln1b_ref,
                   wqkv_ref, bqkv_ref, wo_ref, bo_ref,
                   ln2g_ref, ln2b_ref,
                   w1_ref, b1_ref, w2_ref, b2_ref,
                   fing_ref, finb_ref,
                   o_ref,
                   x_scr, qkv_scr, ctx_scr,
                   *, seq, hidden, heads, head_dim, matmul_dtype):
    layer = pl.program_id(1)
    D, hd, H = hidden, head_dim, heads

    # ---- embedding lookup: first layer step of each row tile only ----
    # TODO(synk): at the real NT vocab (~4k 6-mers) replace the one-hot matmul
    # with a scalar-prefetch / pl.Element row gather; at V=8 a bf16 one-hot
    # matmul is essentially free.
    @pl.when(layer == 0)
    def _():
        tok = tok_ref[...]                                       # (S, 1) int32
        vocab = emb_ref.shape[0]
        iota = jax.lax.broadcasted_iota(jnp.int32, (seq, vocab), 1)
        onehot = (iota == tok).astype(matmul_dtype)              # (S, V) bf16
        x_scr[...] = jnp.dot(onehot, emb_ref[...],
                             preferred_element_type=jnp.float32)

    x = x_scr[...]                                               # (S, D) f32

    # ---- self-attention block (pre-LN) ----
    # TODO(synk): rotary position embeddings of the real ESM/NT encoder omitted.
    xn = _layer_norm(x, ln1g_ref[...], ln1b_ref[...])

    # One fused lane-dense QKV projection (N = 3*D) instead of 3*H narrow matmuls.
    qkv_scr[...] = _mm(xn, wqkv_ref[...]) + bqkv_ref[...]        # (S, 3*D) f32

    # Batched multi-head attention: heads stacked on a leading batch axis via
    # static slices of the VMEM scratch (pure data plumbing — no per-head
    # duplication of score/softmax/context compute).
    q = jnp.stack([qkv_scr[:, h * hd:(h + 1) * hd] for h in range(H)], axis=0)
    k = jnp.stack([qkv_scr[:, D + h * hd:D + (h + 1) * hd] for h in range(H)], axis=0)
    v = jnp.stack([qkv_scr[:, 2 * D + h * hd:2 * D + (h + 1) * hd] for h in range(H)], axis=0)

    scale = jnp.float32(1.0 / math.sqrt(hd))
    s = jnp.einsum('hqd,hkd->hqk',
                   q.astype(matmul_dtype), k.astype(matmul_dtype),
                   preferred_element_type=jnp.float32) * scale   # (H, S, S)
    # TODO(synk): at real sequence lengths stream K/V blocks with an online
    # (flash-style) softmax instead of materializing the full (H, S, S) scores.
    s = s - jnp.max(s, axis=-1, keepdims=True)
    p = jnp.exp(s)
    p = p * pl.reciprocal(jnp.sum(p, axis=-1, keepdims=True), approx=True)
    ctx = jnp.einsum('hqk,hkd->hqd',
                     p.astype(matmul_dtype), v.astype(matmul_dtype),
                     preferred_element_type=jnp.float32)         # (H, S, hd)

    # Re-pack heads lane-wise so the output projection is one dense K=D matmul.
    for h in range(H):
        ctx_scr[:, h * hd:(h + 1) * hd] = ctx[h]
    x = x + _mm(ctx_scr[...], wo_ref[...]) + bo_ref[...]

    # ---- feed-forward block (pre-LN) ----
    xn2 = _layer_norm(x, ln2g_ref[...], ln2b_ref[...])
    h1 = _gelu(_mm(xn2, w1_ref[...]) + b1_ref[...])
    x = x + _mm(h1, w2_ref[...]) + b2_ref[...]

    x_scr[...] = x

    # ---- final LayerNorm + store, last layer step only ----
    # TODO(synk): at D=32 this store is lane-masked (last dim < 128); a
    # lane-dense repack needs a minor-dim reshape — irrelevant at real D=1280.
    @pl.when(layer == pl.num_programs(1) - 1)
    def _():
        o_ref[...] = _layer_norm(x, fing_ref[...], finb_ref[...]).astype(o_ref.dtype)


# ------------------------------ model wrapper ---------------------------------

class NucleotideTransformerModelPallas:
    """Synthetic JAX/Pallas re-implementation of NucleotideTransformerModel."""

    # TODO(synk): the real HF tokenizer is a 6-mer BPE vocab; we use a simple
    # character-level tokenizer (CLS + {A,C,G,T,N}) as deterministic glue.
    _CHAR2ID = {'A': 2, 'C': 3, 'G': 4, 'T': 5, 'N': 6}
    _CLS_ID = 0
    _VOCAB = 8

    def __init__(self, hidden=32, heads=2, num_layers=2, ffn=128,
                 del_special_tokens=True, matmul_dtype=jnp.bfloat16, seed=0):
        assert hidden % heads == 0
        self.hidden = hidden
        self.heads = heads
        self.head_dim = hidden // heads
        self.num_layers = num_layers
        self.ffn = ffn
        self.del_special_tokens = del_special_tokens
        self.matmul_dtype = matmul_dtype

        D, F, V = hidden, ffn, self._VOCAB
        L = num_layers

        key = jax.random.PRNGKey(seed)
        ks = jax.random.split(key, 5)

        # Matmul weights / embedding stored directly in matmul_dtype (bf16):
        # halves per-layer weight DMA bytes and double-buffered VMEM footprint.
        def nrm(k, shape, scale):
            return (scale * jax.random.normal(k, shape)).astype(matmul_dtype)

        self.embedding = nrm(ks[0], (V, D), 0.02)

        # Per-layer weights stacked along a leading L axis; Q/K/V packed into
        # one (D, 3*D) matrix and O kept as a dense (D, D) matrix so every
        # matmul is lane/contraction dense.
        self.params = {
            'ln1_g': jnp.ones((L, 1, D), jnp.float32),
            'ln1_b': jnp.zeros((L, 1, D), jnp.float32),
            'wqkv': nrm(ks[1], (L, D, 3 * D), 1.0 / math.sqrt(D)),
            'bqkv': jnp.zeros((L, 1, 3 * D), jnp.float32),
            'wo': nrm(ks[2], (L, D, D), 1.0 / math.sqrt(D)),
            'bo': jnp.zeros((L, 1, D), jnp.float32),
            'ln2_g': jnp.ones((L, 1, D), jnp.float32),
            'ln2_b': jnp.zeros((L, 1, D), jnp.float32),
            'w1': nrm(ks[3], (L, D, F), 1.0 / math.sqrt(D)),
            'b1': jnp.zeros((L, 1, F), jnp.float32),
            'w2': nrm(ks[4], (L, F, D), 1.0 / math.sqrt(F)),
            'b2': jnp.zeros((L, 1, D), jnp.float32),
        }
        self.final_ln_g = jnp.ones((1, D), jnp.float32)
        self.final_ln_b = jnp.zeros((1, D), jnp.float32)

    # ---- tokenizer (glue) ----
    def tokenize(self, seqs):
        lengths = {len(s) for s in seqs}
        assert len(lengths) == 1, "this synthetic tokenizer requires equal-length seqs"
        ids = [[self._CLS_ID] + [self._CHAR2ID.get(c.upper(), 6) for c in s]
               for s in seqs]
        return jnp.asarray(ids, dtype=jnp.int32)      # (B, S)

    # ---- single fused Pallas encoder call ----
    def _encode(self, tok_flat, batch, seq):
        D, F, V = self.hidden, self.ffn, self._VOCAB
        H, hd, L = self.heads, self.head_dim, self.num_layers

        def stacked(shape):
            zeros = (0,) * (len(shape) - 1)
            return pl.BlockSpec((None,) + tuple(shape[1:]),
                                lambda b, l: (l,) + zeros)

        def replicated(shape):
            zeros = (0,) * len(shape)
            return pl.BlockSpec(tuple(shape), lambda b, l: zeros)

        p = self.params
        args = (tok_flat, self.embedding,
                p['ln1_g'], p['ln1_b'],
                p['wqkv'], p['bqkv'], p['wo'], p['bo'],
                p['ln2_g'], p['ln2_b'],
                p['w1'], p['b1'], p['w2'], p['b2'],
                self.final_ln_g, self.final_ln_b)

        in_specs = [
            pl.BlockSpec((seq, 1), lambda b, l: (b, 0)),         # token ids (per row tile)
            replicated((V, D)),                                  # embedding table
            stacked((L, 1, D)), stacked((L, 1, D)),              # ln1 g/b
            stacked((L, D, 3 * D)), stacked((L, 1, 3 * D)),      # wqkv, bqkv
            stacked((L, D, D)), stacked((L, 1, D)),              # wo, bo
            stacked((L, 1, D)), stacked((L, 1, D)),              # ln2 g/b
            stacked((L, D, F)), stacked((L, 1, F)),              # w1, b1
            stacked((L, F, D)), stacked((L, 1, D)),              # w2, b2
            replicated((1, D)), replicated((1, D)),              # final LN g/b
        ]

        kernel = functools.partial(
            encoder_kernel, seq=seq, hidden=D, heads=H, head_dim=hd,
            matmul_dtype=self.matmul_dtype)

        # grid = (row tiles, layers): the leading "parallel" row-tile axis (one
        # sequence per tile) lets v7x's two TensorCores split the batch, while
        # the inner "arbitrary" layer axis keeps per-layer weight
        # double-buffering on each core.  The hidden state stays resident in a
        # per-tile VMEM scratch across the layer loop.
        # TODO(synk): at real NT sizes (D=1280, F=5120, S~1000) additionally
        # tile the FFN along F and stream K/V (flash-style) so the working set
        # fits v7x's 64 MiB VMEM.
        return pl.pallas_call(
            kernel,
            out_shape=jax.ShapeDtypeStruct((batch * seq, D), jnp.float32),
            grid=(batch, L),
            in_specs=in_specs,
            out_specs=pl.BlockSpec((seq, D), lambda b, l: (b, 0)),
            scratch_shapes=[pltpu.VMEM((seq, D), jnp.float32),       # hidden state
                            pltpu.VMEM((seq, 3 * D), jnp.float32),   # fused QKV
                            pltpu.VMEM((seq, D), jnp.float32)],      # packed contexts
            compiler_params=pltpu.CompilerParams(
                dimension_semantics=("parallel", "arbitrary"),
                vmem_limit_bytes=48 * 1024 * 1024),
        )(*args)

    def __call__(self, seqs):
        token_ids = self.tokenize(seqs)               # (B, S) int32, S = len+1 (CLS)
        B, S = token_ids.shape
        tok_flat = token_ids.reshape(B * S, 1)
        x = self._encode(tok_flat, B, S)              # (B*S, D) == hidden_states[-1]
        embeddings = x.reshape(B, S, self.hidden)
        if self.del_special_tokens:
            embeddings = embeddings[:, 1:]            # drop CLS token
        return embeddings


# --------------------------------- main ---------------------------------------

if __name__ == "__main__":
    model = NucleotideTransformerModelPallas(hidden=32, heads=2, num_layers=2,
                                             ffn=128, del_special_tokens=True,
                                             seed=0)
    # two sequences of length 7 -> tokenized length S = 8 (CLS + 7)
    seqs = ["ACGTACG", "TTGCANN"]
    out = model(seqs)
    out = jax.block_until_ready(out)
    assert out.shape == (2, 7, 32), out.shape
    assert bool(jnp.all(jnp.isfinite(out)))
    print("KERNEL_OK")
</pallas_src>

<mosaic_0001>
module attributes {stable_mosaic.version = 11 : i64} {
  func.func @encoder_kernel(%arg0: i32, %arg1: i32, %arg2: memref<8x1xi32, #tpu.memory_space<vmem>>, %arg3: memref<8x32xbf16, #tpu.memory_space<vmem>>, %arg4: memref<1x1x32xf32, #tpu.memory_space<vmem>>, %arg5: memref<1x1x32xf32, #tpu.memory_space<vmem>>, %arg6: memref<1x32x96xbf16, #tpu.memory_space<vmem>>, %arg7: memref<1x1x96xf32, #tpu.memory_space<vmem>>, %arg8: memref<1x32x32xbf16, #tpu.memory_space<vmem>>, %arg9: memref<1x1x32xf32, #tpu.memory_space<vmem>>, %arg10: memref<1x1x32xf32, #tpu.memory_space<vmem>>, %arg11: memref<1x1x32xf32, #tpu.memory_space<vmem>>, %arg12: memref<1x32x128xbf16, #tpu.memory_space<vmem>>, %arg13: memref<1x1x128xf32, #tpu.memory_space<vmem>>, %arg14: memref<1x128x32xbf16, #tpu.memory_space<vmem>>, %arg15: memref<1x1x32xf32, #tpu.memory_space<vmem>>, %arg16: memref<1x32xf32, #tpu.memory_space<vmem>>, %arg17: memref<1x32xf32, #tpu.memory_space<vmem>>, %arg18: memref<8x32xf32, #tpu.memory_space<vmem>>, %arg19: memref<8x32xf32, #tpu.memory_space<vmem>>, %arg20: memref<8x96xf32, #tpu.memory_space<vmem>>, %arg21: memref<8x32xf32, #tpu.memory_space<vmem>>) attributes {dimension_semantics = [#tpu.dimension_semantics<parallel>, #tpu.dimension_semantics<arbitrary>], iteration_bounds = array<i64: 2, 2>, scalar_prefetch = 0 : i64, scratch_operands = 3 : i64, tpu.core_type = #tpu.core_type<tc>, window_params = [{transform_indices = @transform_0, window_bounds = array<i64: 8, 1>}, {pipeline_mode = #tpu.pipeline_mode<synchronous>, transform_indices = @transform_1, window_bounds = array<i64: 8, 32>}, {transform_indices = @transform_2, window_bounds = array<i64: 1, 1, 32>}, {transform_indices = @transform_3, window_bounds = array<i64: 1, 1, 32>}, {transform_indices = @transform_4, window_bounds = array<i64: 1, 32, 96>}, {transform_indices = @transform_5, window_bounds = array<i64: 1, 1, 96>}, {transform_indices = @transform_6, window_bounds = array<i64: 1, 32, 32>}, {transform_indices = @transform_7, window_bounds = array<i64: 1, 1, 32>}, {transform_indices = @transform_8, window_bounds = array<i64: 1, 1, 32>}, {transform_indices = @transform_9, window_bounds = array<i64: 1, 1, 32>}, {transform_indices = @transform_10, window_bounds = array<i64: 1, 32, 128>}, {transform_indices = @transform_11, window_bounds = array<i64: 1, 1, 128>}, {transform_indices = @transform_12, window_bounds = array<i64: 1, 128, 32>}, {transform_indices = @transform_13, window_bounds = array<i64: 1, 1, 32>}, {pipeline_mode = #tpu.pipeline_mode<synchronous>, transform_indices = @transform_14, window_bounds = array<i64: 1, 32>}, {pipeline_mode = #tpu.pipeline_mode<synchronous>, transform_indices = @transform_15, window_bounds = array<i64: 1, 32>}, {transform_indices = @transform_16, window_bounds = array<i64: 8, 32>}]} {
    %c0_i32 = arith.constant 0 : i32
    %0 = arith.cmpi eq, %arg1, %c0_i32 : i32
    %1 = arith.extui %0 : i1 to i32
    %c0_i32_0 = arith.constant 0 : i32
    %2 = arith.cmpi ne, %1, %c0_i32_0 : i32
    scf.if %2 {
      %c0_78 = arith.constant 0 : index
      %c0_79 = arith.constant 0 : index
      %144 = vector.load %arg2[%c0_78, %c0_79] : memref<8x1xi32, #tpu.memory_space<vmem>>, vector<8x1xi32>
      %145 = tpu.iota {dimensions = array<i32: 1>} : vector<8x8xi32>
      %146 = vector.broadcast %144 : vector<8x1xi32> to vector<8x8xi32>
      %147 = arith.cmpi eq, %145, %146 : vector<8x8xi32>
      %148 = arith.extui %147 : vector<8x8xi1> to vector<8x8xi32>
      %149 = arith.sitofp %148 : vector<8x8xi32> to vector<8x8xf32>
      %150 = arith.truncf %149 : vector<8x8xf32> to vector<8x8xbf16>
      %c0_80 = arith.constant 0 : index
      %c0_81 = arith.constant 0 : index
      %151 = vector.load %arg3[%c0_80, %c0_81] : memref<8x32xbf16, #tpu.memory_space<vmem>>, vector<8x32xbf16>
      %cst_82 = arith.constant dense<0.000000e+00> : vector<8x32xf32>
      %152 = tpu.matmul %150, %151, %cst_82 {dimension_numbers = #tpu.dot_dimension_numbers<[1], [0], [0], [1], [0, 0, 1, 1], [], []>} : vector<8x8xbf16>, vector<8x32xbf16>, vector<8x32xf32> -> vector<8x32xf32>
      %c0_83 = arith.constant 0 : index
      %c0_84 = arith.constant 0 : index
      %153 = vector.load %arg19[%c0_83, %c0_84] : memref<8x32xf32, #tpu.memory_space<vmem>>, vector<8x32xf32>
      tpu.vector_store %arg19[%c0_83, %c0_84], %152 {strides = array<i32>} : memref<8x32xf32, #tpu.memory_space<vmem>>, vector<8x32xf32>,
    } else {
    }
    %c0 = arith.constant 0 : index
    %c0_1 = arith.constant 0 : index
    %3 = vector.load %arg19[%c0, %c0_1] : memref<8x32xf32, #tpu.memory_space<vmem>>, vector<8x32xf32>
    %c0_2 = arith.constant 0 : index
    %c0_3 = arith.constant 0 : index
    %c0_4 = arith.constant 0 : index
    %4 = vector.load %arg4[%c0_2, %c0_3, %c0_4] : memref<1x1x32xf32, #tpu.memory_space<vmem>>, vector<1x1x32xf32>
    %5 = vector.shape_cast %4 : vector<1x1x32xf32> to vector<1x32xf32>
    %c0_5 = arith.constant 0 : index
    %c0_6 = arith.constant 0 : index
    %c0_7 = arith.constant 0 : index
    %6 = vector.load %arg5[%c0_5, %c0_6, %c0_7] : memref<1x1x32xf32, #tpu.memory_space<vmem>>, vector<1x1x32xf32>
    %7 = vector.shape_cast %6 : vector<1x1x32xf32> to vector<1x32xf32>
    %cst = arith.constant dense<0.000000e+00> : vector<8xf32>
    %8 = vector.multi_reduction <add>, %3, %cst [1] : vector<8x32xf32> to vector<8xf32>
    %9 = vector.shape_cast %8 : vector<8xf32> to vector<8x1xf32>
    %cst_8 = arith.constant 3.200000e+01 : f32
    %10 = vector.broadcast %cst_8 : f32 to vector<8x1xf32>
    %11 = arith.divf %9, %10 : vector<8x1xf32>
    %12 = vector.broadcast %11 : vector<8x1xf32> to vector<8x32xf32>
    %13 = arith.subf %3, %12 : vector<8x32xf32>
    %14 = arith.mulf %13, %13 : vector<8x32xf32>
    %cst_9 = arith.constant dense<0.000000e+00> : vector<8xf32>
    %15 = vector.multi_reduction <add>, %14, %cst_9 [1] : vector<8x32xf32> to vector<8xf32>
    %16 = vector.shape_cast %15 : vector<8xf32> to vector<8x1xf32>
    %cst_10 = arith.constant 3.200000e+01 : f32
    %17 = vector.broadcast %cst_10 : f32 to vector<8x1xf32>
    %18 = arith.divf %16, %17 : vector<8x1xf32>
    %cst_11 = arith.constant 9.99999974E-6 : f32
    %19 = vector.broadcast %cst_11 : f32 to vector<8x1xf32>
    %20 = arith.addf %18, %19 : vector<8x1xf32>
    %21 = math.rsqrt %20 : vector<8x1xf32>
    %22 = vector.broadcast %21 : vector<8x1xf32> to vector<8x32xf32>
    %23 = arith.mulf %13, %22 : vector<8x32xf32>
    %24 = vector.broadcast %5 : vector<1x32xf32> to vector<8x32xf32>
    %25 = arith.mulf %23, %24 : vector<8x32xf32>
    %26 = vector.broadcast %7 : vector<1x32xf32> to vector<8x32xf32>
    %27 = arith.addf %25, %26 : vector<8x32xf32>
    %c0_12 = arith.constant 0 : index
    %c0_13 = arith.constant 0 : index
    %c0_14 = arith.constant 0 : index
    %28 = vector.load %arg6[%c0_12, %c0_13, %c0_14] : memref<1x32x96xbf16, #tpu.memory_space<vmem>>, vector<1x32x96xbf16>
    %29 = vector.shape_cast %28 : vector<1x32x96xbf16> to vector<32x96xbf16>
    %30 = arith.truncf %27 : vector<8x32xf32> to vector<8x32xbf16>
    %cst_15 = arith.constant dense<0.000000e+00> : vector<8x96xf32>
    %31 = tpu.matmul %30, %29, %cst_15 {dimension_numbers = #tpu.dot_dimension_numbers<[1], [0], [0], [1], [0, 0, 1, 1], [], []>} : vector<8x32xbf16>, vector<32x96xbf16>, vector<8x96xf32> -> vector<8x96xf32>
    %c0_16 = arith.constant 0 : index
    %c0_17 = arith.constant 0 : index
    %c0_18 = arith.constant 0 : index
    %32 = vector.load %arg7[%c0_16, %c0_17, %c0_18] : memref<1x1x96xf32, #tpu.memory_space<vmem>>, vector<1x1x96xf32>
    %33 = vector.shape_cast %32 : vector<1x1x96xf32> to vector<1x96xf32>
    %34 = vector.broadcast %33 : vector<1x96xf32> to vector<8x96xf32>
    %35 = arith.addf %31, %34 : vector<8x96xf32>
    %c0_19 = arith.constant 0 : index
    %c0_20 = arith.constant 0 : index
    %36 = vector.load %arg20[%c0_19, %c0_20] : memref<8x96xf32, #tpu.memory_space<vmem>>, vector<8x96xf32>
    tpu.vector_store %arg20[%c0_19, %c0_20], %35 {strides = array<i32>} : memref<8x96xf32, #tpu.memory_space<vmem>>, vector<8x96xf32>,
    %c0_21 = arith.constant 0 : index
    %c0_22 = arith.constant 0 : index
    %37 = vector.load %arg20[%c0_21, %c0_22] : memref<8x96xf32, #tpu.memory_space<vmem>>, vector<8x16xf32>
    %c0_23 = arith.constant 0 : index
    %c16 = arith.constant 16 : index
    %38 = vector.load %arg20[%c0_23, %c16] : memref<8x96xf32, #tpu.memory_space<vmem>>, vector<8x16xf32>
    %39 = vector.shape_cast %37 : vector<8x16xf32> to vector<1x8x16xf32>
    %40 = vector.shape_cast %38 : vector<8x16xf32> to vector<1x8x16xf32>
    %41 = tpu.concatenate %39, %40 in 0 : vector<1x8x16xf32>, vector<1x8x16xf32> -> vector<2x8x16xf32>
    %c0_24 = arith.constant 0 : index
    %c32 = arith.constant 32 : index
    %42 = vector.load %arg20[%c0_24, %c32] : memref<8x96xf32, #tpu.memory_space<vmem>>, vector<8x16xf32>
    %c0_25 = arith.constant 0 : index
    %c48 = arith.constant 48 : index
    %43 = vector.load %arg20[%c0_25, %c48] : memref<8x96xf32, #tpu.memory_space<vmem>>, vector<8x16xf32>
    %44 = vector.shape_cast %42 : vector<8x16xf32> to vector<1x8x16xf32>
    %45 = vector.shape_cast %43 : vector<8x16xf32> to vector<1x8x16xf32>
    %46 = tpu.concatenate %44, %45 in 0 : vector<1x8x16xf32>, vector<1x8x16xf32> -> vector<2x8x16xf32>
    %c0_26 = arith.constant 0 : index
    %c64 = arith.constant 64 : index
    %47 = vector.load %arg20[%c0_26, %c64] : memref<8x96xf32, #tpu.memory_space<vmem>>, vector<8x16xf32>
    %c0_27 = arith.constant 0 : index
    %c80 = arith.constant 80 : index
    %48 = vector.load %arg20[%c0_27, %c80] : memref<8x96xf32, #tpu.memory_space<vmem>>, vector<8x16xf32>
    %49 = vector.shape_cast %47 : vector<8x16xf32> to vector<1x8x16xf32>
    %50 = vector.shape_cast %48 : vector<8x16xf32> to vector<1x8x16xf32>
    %51 = tpu.concatenate %49, %50 in 0 : vector<1x8x16xf32>, vector<1x8x16xf32> -> vector<2x8x16xf32>
    %52 = arith.truncf %41 : vector<2x8x16xf32> to vector<2x8x16xbf16>
    %53 = arith.truncf %46 : vector<2x8x16xf32> to vector<2x8x16xbf16>
    "tpu.trace_start"() <{level = 10 : i32, message = "hqd,hkd->hqk"}> : () -> ()
    %cst_28 = arith.constant dense<0.000000e+00> : vector<2x8x8xf32>
    %54 = tpu.matmul %52, %53, %cst_28 {dimension_numbers = #tpu.dot_dimension_numbers<[2], [2], [1], [1], [0, 0, 0, 1, 1, 1], [0], [0]>} : vector<2x8x16xbf16>, vector<2x8x16xbf16>, vector<2x8x8xf32> -> vector<2x8x8xf32>
    "tpu.trace_stop"() : () -> ()
    %cst_29 = arith.constant 2.500000e-01 : f32
    %55 = vector.broadcast %cst_29 : f32 to vector<2x8x8xf32>
    %56 = arith.mulf %54, %55 : vector<2x8x8xf32>
    %cst_30 = arith.constant dense<0xFF800000> : vector<2x8xf32>
    %57 = vector.multi_reduction <maximumf>, %56, %cst_30 [2] : vector<2x8x8xf32> to vector<2x8xf32>
    %58 = vector.shape_cast %57 : vector<2x8xf32> to vector<2x8x1xf32>
    %59 = vector.broadcast %58 : vector<2x8x1xf32> to vector<2x8x8xf32>
    %60 = arith.subf %56, %59 : vector<2x8x8xf32>
    %61 = math.exp %60 : vector<2x8x8xf32>
    %cst_31 = arith.constant dense<0.000000e+00> : vector<2x8xf32>
    %62 = vector.multi_reduction <add>, %61, %cst_31 [2] : vector<2x8x8xf32> to vector<2x8xf32>
    %63 = vector.shape_cast %62 : vector<2x8xf32> to vector<2x8x1xf32>
    %64 = tpu.reciprocal %63 {approx = true} : vector<2x8x1xf32> -> vector<2x8x1xf32>
    %65 = vector.broadcast %64 : vector<2x8x1xf32> to vector<2x8x8xf32>
    %66 = arith.mulf %61, %65 : vector<2x8x8xf32>
    %67 = arith.truncf %66 : vector<2x8x8xf32> to vector<2x8x8xbf16>
    %68 = arith.truncf %51 : vector<2x8x16xf32> to vector<2x8x16xbf16>
    "tpu.trace_start"() <{level = 10 : i32, message = "hqk,hkd->hqd"}> : () -> ()
    %cst_32 = arith.constant dense<0.000000e+00> : vector<2x8x16xf32>
    %69 = tpu.matmul %67, %68, %cst_32 {dimension_numbers = #tpu.dot_dimension_numbers<[2], [1], [1], [2], [0, 0, 0, 1, 1, 2], [0], [0]>} : vector<2x8x8xbf16>, vector<2x8x16xbf16>, vector<2x8x16xf32> -> vector<2x8x16xf32>
    "tpu.trace_stop"() : () -> ()
    %70 = vector.extract_strided_slice %69 {offsets = [0, 0, 0], sizes = [1, 8, 16], strides = [1, 1, 1]} : vector<2x8x16xf32> to vector<1x8x16xf32>
    %71 = vector.shape_cast %70 : vector<1x8x16xf32> to vector<8x16xf32>
    %c0_33 = arith.constant 0 : index
    %c0_34 = arith.constant 0 : index
    %72 = vector.load %arg21[%c0_33, %c0_34] : memref<8x32xf32, #tpu.memory_space<vmem>>, vector<8x16xf32>
    tpu.vector_store %arg21[%c0_33, %c0_34], %71 {strides = array<i32>} : memref<8x32xf32, #tpu.memory_space<vmem>>, vector<8x16xf32>,
    %73 = vector.extract_strided_slice %69 {offsets = [1, 0, 0], sizes = [1, 8, 16], strides = [1, 1, 1]} : vector<2x8x16xf32> to vector<1x8x16xf32>
    %74 = vector.shape_cast %73 : vector<1x8x16xf32> to vector<8x16xf32>
    %c0_35 = arith.constant 0 : index
    %c16_36 = arith.constant 16 : index
    %75 = vector.load %arg21[%c0_35, %c16_36] : memref<8x32xf32, #tpu.memory_space<vmem>>, vector<8x16xf32>
    tpu.vector_store %arg21[%c0_35, %c16_36], %74 {strides = array<i32>} : memref<8x32xf32, #tpu.memory_space<vmem>>, vector<8x16xf32>,
    %c0_37 = arith.constant 0 : index
    %c0_38 = arith.constant 0 : index
    %76 = vector.load %arg21[%c0_37, %c0_38] : memref<8x32xf32, #tpu.memory_space<vmem>>, vector<8x32xf32>
    %c0_39 = arith.constant 0 : index
    %c0_40 = arith.constant 0 : index
    %c0_41 = arith.constant 0 : index
    %77 = vector.load %arg8[%c0_39, %c0_40, %c0_41] : memref<1x32x32xbf16, #tpu.memory_space<vmem>>, vector<1x32x32xbf16>
    %78 = vector.shape_cast %77 : vector<1x32x32xbf16> to vector<32x32xbf16>
    %79 = arith.truncf %76 : vector<8x32xf32> to vector<8x32xbf16>
    %cst_42 = arith.constant dense<0.000000e+00> : vector<8x32xf32>
    %80 = tpu.matmul %79, %78, %cst_42 {dimension_numbers = #tpu.dot_dimension_numbers<[1], [0], [0], [1], [0, 0, 1, 1], [], []>} : vector<8x32xbf16>, vector<32x32xbf16>, vector<8x32xf32> -> vector<8x32xf32>
    %81 = arith.addf %3, %80 : vector<8x32xf32>
    %c0_43 = arith.constant 0 : index
    %c0_44 = arith.constant 0 : index
    %c0_45 = arith.constant 0 : index
    %82 = vector.load %arg9[%c0_43, %c0_44, %c0_45] : memref<1x1x32xf32, #tpu.memory_space<vmem>>, vector<1x1x32xf32>
    %83 = vector.shape_cast %82 : vector<1x1x32xf32> to vector<1x32xf32>
    %84 = vector.broadcast %83 : vector<1x32xf32> to vector<8x32xf32>
    %85 = arith.addf %81, %84 : vector<8x32xf32>
    %c0_46 = arith.constant 0 : index
    %c0_47 = arith.constant 0 : index
    %c0_48 = arith.constant 0 : index
    %86 = vector.load %arg10[%c0_46, %c0_47, %c0_48] : memref<1x1x32xf32, #tpu.memory_space<vmem>>, vector<1x1x32xf32>
    %87 = vector.shape_cast %86 : vector<1x1x32xf32> to vector<1x32xf32>
    %c0_49 = arith.constant 0 : index
    %c0_50 = arith.constant 0 : index
    %c0_51 = arith.constant 0 : index
    %88 = vector.load %arg11[%c0_49, %c0_50, %c0_51] : memref<1x1x32xf32, #tpu.memory_space<vmem>>, vector<1x1x32xf32>
    %89 = vector.shape_cast %88 : vector<1x1x32xf32> to vector<1x32xf32>
    %cst_52 = arith.constant dense<0.000000e+00> : vector<8xf32>
    %90 = vector.multi_reduction <add>, %85, %cst_52 [1] : vector<8x32xf32> to vector<8xf32>
    %91 = vector.shape_cast %90 : vector<8xf32> to vector<8x1xf32>
    %cst_53 = arith.constant 3.200000e+01 : f32
    %92 = vector.broadcast %cst_53 : f32 to vector<8x1xf32>
    %93 = arith.divf %91, %92 : vector<8x1xf32>
    %94 = vector.broadcast %93 : vector<8x1xf32> to vector<8x32xf32>
    %95 = arith.subf %85, %94 : vector<8x32xf32>
    %96 = arith.mulf %95, %95 : vector<8x32xf32>
    %cst_54 = arith.constant dense<0.000000e+00> : vector<8xf32>
    %97 = vector.multi_reduction <add>, %96, %cst_54 [1] : vector<8x32xf32> to vector<8xf32>
    %98 = vector.shape_cast %97 : vector<8xf32> to vector<8x1xf32>
    %cst_55 = arith.constant 3.200000e+01 : f32
    %99 = vector.broadcast %cst_55 : f32 to vector<8x1xf32>
    %100 = arith.divf %98, %99 : vector<8x1xf32>
    %cst_56 = arith.constant 9.99999974E-6 : f32
    %101 = vector.broadcast %cst_56 : f32 to vector<8x1xf32>
    %102 = arith.addf %100, %101 : vector<8x1xf32>
    %103 = math.rsqrt %102 : vector<8x1xf32>
    %104 = vector.broadcast %103 : vector<8x1xf32> to vector<8x32xf32>
    %105 = arith.mulf %95, %104 : vector<8x32xf32>
    %106 = vector.broadcast %87 : vector<1x32xf32> to vector<8x32xf32>
    %107 = arith.mulf %105, %106 : vector<8x32xf32>
    %108 = vector.broadcast %89 : vector<1x32xf32> to vector<8x32xf32>
    %109 = arith.addf %107, %108 : vector<8x32xf32>
    %c0_57 = arith.constant 0 : index
    %c0_58 = arith.constant 0 : index
    %c0_59 = arith.constant 0 : index
    %110 = vector.load %arg12[%c0_57, %c0_58, %c0_59] : memref<1x32x128xbf16, #tpu.memory_space<vmem>>, vector<1x32x128xbf16>
    %111 = vector.shape_cast %110 : vector<1x32x128xbf16> to vector<32x128xbf16>
    %112 = arith.truncf %109 : vector<8x32xf32> to vector<8x32xbf16>
    %cst_60 = arith.constant dense<0.000000e+00> : vector<8x128xf32>
    %113 = tpu.matmul %112, %111, %cst_60 {dimension_numbers = #tpu.dot_dimension_numbers<[1], [0], [0], [1], [0, 0, 1, 1], [], []>} : vector<8x32xbf16>, vector<32x128xbf16>, vector<8x128xf32> -> vector<8x128xf32>
    %c0_61 = arith.constant 0 : index
    %c0_62 = arith.constant 0 : index
    %c0_63 = arith.constant 0 : index
    %114 = vector.load %arg13[%c0_61, %c0_62, %c0_63] : memref<1x1x128xf32, #tpu.memory_space<vmem>>, vector<1x1x128xf32>
    %115 = vector.shape_cast %114 : vector<1x1x128xf32> to vector<1x128xf32>
    %116 = vector.broadcast %115 : vector<1x128xf32> to vector<8x128xf32>
    %117 = arith.addf %113, %116 : vector<8x128xf32>
    %cst_64 = arith.constant 5.000000e-01 : f32
    %118 = vector.broadcast %cst_64 : f32 to vector<8x128xf32>
    %119 = arith.mulf %118, %117 : vector<8x128xf32>
    %cst_65 = arith.constant 4.471500e-02 : f32
    %120 = vector.broadcast %cst_65 : f32 to vector<8x128xf32>
    %121 = arith.mulf %120, %117 : vector<8x128xf32>
    %122 = arith.mulf %121, %117 : vector<8x128xf32>
    %123 = arith.mulf %122, %117 : vector<8x128xf32>
    %124 = arith.addf %117, %123 : vector<8x128xf32>
    %cst_66 = arith.constant 0.797884583 : f32
    %125 = vector.broadcast %cst_66 : f32 to vector<8x128xf32>
    %126 = arith.mulf %125, %124 : vector<8x128xf32>
    %127 = math.tanh %126 : vector<8x128xf32>
    %cst_67 = arith.constant 1.000000e+00 : f32
    %128 = vector.broadcast %cst_67 : f32 to vector<8x128xf32>
    %129 = arith.addf %128, %127 : vector<8x128xf32>
    %130 = arith.mulf %119, %129 : vector<8x128xf32>
    %c0_68 = arith.constant 0 : index
    %c0_69 = arith.constant 0 : index
    %c0_70 = arith.constant 0 : index
    %131 = vector.load %arg14[%c0_68, %c0_69, %c0_70] : memref<1x128x32xbf16, #tpu.memory_space<vmem>>, vector<1x128x32xbf16>
    %132 = vector.shape_cast %131 : vector<1x128x32xbf16> to vector<128x32xbf16>
    %133 = arith.truncf %130 : vector<8x128xf32> to vector<8x128xbf16>
    %cst_71 = arith.constant dense<0.000000e+00> : vector<8x32xf32>
    %134 = tpu.matmul %133, %132, %cst_71 {dimension_numbers = #tpu.dot_dimension_numbers<[1], [0], [0], [1], [0, 0, 1, 1], [], []>} : vector<8x128xbf16>, vector<128x32xbf16>, vector<8x32xf32> -> vector<8x32xf32>
    %135 = arith.addf %85, %134 : vector<8x32xf32>
    %c0_72 = arith.constant 0 : index
    %c0_73 = arith.constant 0 : index
    %c0_74 = arith.constant 0 : index
    %136 = vector.load %arg15[%c0_72, %c0_73, %c0_74] : memref<1x1x32xf32, #tpu.memory_space<vmem>>, vector<1x1x32xf32>
    %137 = vector.shape_cast %136 : vector<1x1x32xf32> to vector<1x32xf32>
    %138 = vector.broadcast %137 : vector<1x32xf32> to vector<8x32xf32>
    %139 = arith.addf %135, %138 : vector<8x32xf32>
    %c0_75 = arith.constant 0 : index
    %c0_76 = arith.constant 0 : index
    %140 = vector.load %arg19[%c0_75, %c0_76] : memref<8x32xf32, #tpu.memory_space<vmem>>, vector<8x32xf32>
    tpu.vector_store %arg19[%c0_75, %c0_76], %139 {strides = array<i32>} : memref<8x32xf32, #tpu.memory_space<vmem>>, vector<8x32xf32>,
    %c1_i32 = arith.constant 1 : i32
    %141 = arith.cmpi eq, %arg1, %c1_i32 : i32
    %142 = arith.extui %141 : i1 to i32
    %c0_i32_77 = arith.constant 0 : i32
    %143 = arith.cmpi ne, %142, %c0_i32_77 : i32
    scf.if %143 {
      %c0_78 = arith.constant 0 : index
      %c0_79 = arith.constant 0 : index
      %144 = vector.load %arg16[%c0_78, %c0_79] : memref<1x32xf32, #tpu.memory_space<vmem>>, vector<1x32xf32>
      %c0_80 = arith.constant 0 : index
      %c0_81 = arith.constant 0 : index
      %145 = vector.load %arg17[%c0_80, %c0_81] : memref<1x32xf32, #tpu.memory_space<vmem>>, vector<1x32xf32>
      %cst_82 = arith.constant dense<0.000000e+00> : vector<8xf32>
      %146 = vector.multi_reduction <add>, %139, %cst_82 [1] : vector<8x32xf32> to vector<8xf32>
      %147 = vector.shape_cast %146 : vector<8xf32> to vector<8x1xf32>
      %cst_83 = arith.constant 3.200000e+01 : f32
      %148 = vector.broadcast %cst_83 : f32 to vector<8x1xf32>
      %149 = arith.divf %147, %148 : vector<8x1xf32>
      %150 = vector.broadcast %149 : vector<8x1xf32> to vector<8x32xf32>
      %151 = arith.subf %139, %150 : vector<8x32xf32>
      %152 = arith.mulf %151, %151 : vector<8x32xf32>
      %cst_84 = arith.constant dense<0.000000e+00> : vector<8xf32>
      %153 = vector.multi_reduction <add>, %152, %cst_84 [1] : vector<8x32xf32> to vector<8xf32>
      %154 = vector.shape_cast %153 : vector<8xf32> to vector<8x1xf32>
      %cst_85 = arith.constant 3.200000e+01 : f32
      %155 = vector.broadcast %cst_85 : f32 to vector<8x1xf32>
      %156 = arith.divf %154, %155 : vector<8x1xf32>
      %cst_86 = arith.constant 9.99999974E-6 : f32
      %157 = vector.broadcast %cst_86 : f32 to vector<8x1xf32>
      %158 = arith.addf %156, %157 : vector<8x1xf32>
      %159 = math.rsqrt %158 : vector<8x1xf32>
      %160 = vector.broadcast %159 : vector<8x1xf32> to vector<8x32xf32>
      %161 = arith.mulf %151, %160 : vector<8x32xf32>
      %162 = vector.broadcast %144 : vector<1x32xf32> to vector<8x32xf32>
      %163 = arith.mulf %161, %162 : vector<8x32xf32>
      %164 = vector.broadcast %145 : vector<1x32xf32> to vector<8x32xf32>
      %165 = arith.addf %163, %164 : vector<8x32xf32>
      %c0_87 = arith.constant 0 : index
      %c0_88 = arith.constant 0 : index
      %166 = vector.load %arg18[%c0_87, %c0_88] : memref<8x32xf32, #tpu.memory_space<vmem>>, vector<8x32xf32>
      tpu.vector_store %arg18[%c0_87, %c0_88], %165 {strides = array<i32>} : memref<8x32xf32, #tpu.memory_space<vmem>>, vector<8x32xf32>,
    } else {
    }
    return
  }
  func.func @transform_0(%arg0: i32, %arg1: i32) -> (i32, i32) {
    %c0_i32 = arith.constant 0 : i32
    %c0_i32_0 = arith.constant 0 : i32
    return %arg0, %c0_i32 : i32, i32
  }
  func.func @transform_1(%arg0: i32, %arg1: i32) -> (i32, i32) {
    %c0_i32 = arith.constant 0 : i32
    %c0_i32_0 = arith.constant 0 : i32
    %c0_i32_1 = arith.constant 0 : i32
    return %c0_i32, %c0_i32_0 : i32, i32
  }
  func.func @transform_2(%arg0: i32, %arg1: i32) -> (i32, i32, i32) {
    %c0_i32 = arith.constant 0 : i32
    %c0_i32_0 = arith.constant 0 : i32
    %c0_i32_1 = arith.constant 0 : i32
    return %arg1, %c0_i32, %c0_i32_0 : i32, i32, i32
  }
  func.func @transform_3(%arg0: i32, %arg1: i32) -> (i32, i32, i32) {
    %c0_i32 = arith.constant 0 : i32
    %c0_i32_0 = arith.constant 0 : i32
    %c0_i32_1 = arith.constant 0 : i32
    return %arg1, %c0_i32, %c0_i32_0 : i32, i32, i32
  }
  func.func @transform_4(%arg0: i32, %arg1: i32) -> (i32, i32, i32) {
    %c0_i32 = arith.constant 0 : i32
    %c0_i32_0 = arith.constant 0 : i32
    %c0_i32_1 = arith.constant 0 : i32
    return %arg1, %c0_i32, %c0_i32_0 : i32, i32, i32
  }
  func.func @transform_5(%arg0: i32, %arg1: i32) -> (i32, i32, i32) {
    %c0_i32 = arith.constant 0 : i32
    %c0_i32_0 = arith.constant 0 : i32
    %c0_i32_1 = arith.constant 0 : i32
    return %arg1, %c0_i32, %c0_i32_0 : i32, i32, i32
  }
  func.func @transform_6(%arg0: i32, %arg1: i32) -> (i32, i32, i32) {
    %c0_i32 = arith.constant 0 : i32
    %c0_i32_0 = arith.constant 0 : i32
    %c0_i32_1 = arith.constant 0 : i32
    return %arg1, %c0_i32, %c0_i32_0 : i32, i32, i32
  }
  func.func @transform_7(%arg0: i32, %arg1: i32) -> (i32, i32, i32) {
    %c0_i32 = arith.constant 0 : i32
    %c0_i32_0 = arith.constant 0 : i32
    %c0_i32_1 = arith.constant 0 : i32
    return %arg1, %c0_i32, %c0_i32_0 : i32, i32, i32
  }
  func.func @transform_8(%arg0: i32, %arg1: i32) -> (i32, i32, i32) {
    %c0_i32 = arith.constant 0 : i32
    %c0_i32_0 = arith.constant 0 : i32
    %c0_i32_1 = arith.constant 0 : i32
    return %arg1, %c0_i32, %c0_i32_0 : i32, i32, i32
  }
  func.func @transform_9(%arg0: i32, %arg1: i32) -> (i32, i32, i32) {
    %c0_i32 = arith.constant 0 : i32
    %c0_i32_0 = arith.constant 0 : i32
    %c0_i32_1 = arith.constant 0 : i32
    return %arg1, %c0_i32, %c0_i32_0 : i32, i32, i32
  }
  func.func @transform_10(%arg0: i32, %arg1: i32) -> (i32, i32, i32) {
    %c0_i32 = arith.constant 0 : i32
    %c0_i32_0 = arith.constant 0 : i32
    %c0_i32_1 = arith.constant 0 : i32
    return %arg1, %c0_i32, %c0_i32_0 : i32, i32, i32
  }
  func.func @transform_11(%arg0: i32, %arg1: i32) -> (i32, i32, i32) {
    %c0_i32 = arith.constant 0 : i32
    %c0_i32_0 = arith.constant 0 : i32
    %c0_i32_1 = arith.constant 0 : i32
    return %arg1, %c0_i32, %c0_i32_0 : i32, i32, i32
  }
  func.func @transform_12(%arg0: i32, %arg1: i32) -> (i32, i32, i32) {
    %c0_i32 = arith.constant 0 : i32
    %c0_i32_0 = arith.constant 0 : i32
    %c0_i32_1 = arith.constant 0 : i32
    return %arg1, %c0_i32, %c0_i32_0 : i32, i32, i32
  }
  func.func @transform_13(%arg0: i32, %arg1: i32) -> (i32, i32, i32) {
    %c0_i32 = arith.constant 0 : i32
    %c0_i32_0 = arith.constant 0 : i32
    %c0_i32_1 = arith.constant 0 : i32
    return %arg1, %c0_i32, %c0_i32_0 : i32, i32, i32
  }
  func.func @transform_14(%arg0: i32, %arg1: i32) -> (i32, i32) {
    %c0_i32 = arith.constant 0 : i32
    %c0_i32_0 = arith.constant 0 : i32
    %c0_i32_1 = arith.constant 0 : i32
    return %c0_i32, %c0_i32_0 : i32, i32
  }
  func.func @transform_15(%arg0: i32, %arg1: i32) -> (i32, i32) {
    %c0_i32 = arith.constant 0 : i32
    %c0_i32_0 = arith.constant 0 : i32
    %c0_i32_1 = arith.constant 0 : i32
    return %c0_i32, %c0_i32_0 : i32, i32
  }
  func.func @transform_16(%arg0: i32, %arg1: i32) -> (i32, i32) {
    %c0_i32 = arith.constant 0 : i32
    %c0_i32_0 = arith.constant 0 : i32
    return %arg0, %c0_i32 : i32, i32
  }
}

</mosaic_0001>

<llo_original>
// kernel: tpu_custom_call.1
$region0: #{tpu_custom_call.1}
  #allocation0 [shape = 'u32[]', space=smem, size = 0x4, offset = 0x4, fixed_abs, tag = 'smem constant byte address 0x4 - core index']
  #allocation1 [shape = 'u32[144,128]{1,0:T(1,128)}', space=vmem, size = 0x12000, scoped, tag = 'internal scratch']
  #allocation2 [shape = 'f32[8,32]{1,0:T(8,128)}', space=vmem, size = 0x1000, scoped, tag = 'scratch operand']
  #allocation3 [shape = 'f32[8,96]{1,0:T(8,128)}', space=vmem, size = 0x1000, scoped, tag = 'scratch operand']
  #allocation4 [shape = 'f32[8,32]{1,0:T(8,128)}', space=vmem, size = 0x1000, scoped, tag = 'scratch operand']
  %s0 = inlined_call_operand.vmem [shape: s32[16,1], index: 0, kind: input, shape index: {}]
  %s1 = inlined_call_operand.vmem [shape: bf16[8,32], index: 1, kind: input, shape index: {}]
  %s2 = inlined_call_operand.vmem [shape: f32[2,1,32], index: 2, kind: input, shape index: {}]
  %s3 = inlined_call_operand.vmem [shape: f32[2,1,32], index: 3, kind: input, shape index: {}]
  %s4 = inlined_call_operand.vmem [shape: bf16[2,32,96], index: 4, kind: input, shape index: {}]
  %s5 = inlined_call_operand.vmem [shape: f32[2,1,96], index: 5, kind: input, shape index: {}]
  %s6 = inlined_call_operand.vmem [shape: bf16[2,32,32], index: 6, kind: input, shape index: {}]
  %s7 = inlined_call_operand.vmem [shape: f32[2,1,32], index: 7, kind: input, shape index: {}]
  %s8 = inlined_call_operand.vmem [shape: f32[2,1,32], index: 8, kind: input, shape index: {}]
  %s9 = inlined_call_operand.vmem [shape: f32[2,1,32], index: 9, kind: input, shape index: {}]
  %s10 = inlined_call_operand.vmem [shape: bf16[2,32,128], index: 10, kind: input, shape index: {}]
  %s11 = inlined_call_operand.vmem [shape: f32[2,1,128], index: 11, kind: input, shape index: {}]
  %s12 = inlined_call_operand.vmem [shape: bf16[2,128,32], index: 12, kind: input, shape index: {}]
  %s13 = inlined_call_operand.vmem [shape: f32[2,1,32], index: 13, kind: input, shape index: {}]
  %s14 = inlined_call_operand.vmem [shape: f32[1,32], index: 14, kind: input, shape index: {}]
  %s15 = inlined_call_operand.vmem [shape: f32[1,32], index: 15, kind: input, shape index: {}]
  %s16 = inlined_call_operand.hbm [shape: f32[16,32], index: 16, kind: output, shape index: {}]
  %s17 = sld [smem:[#allocation0]]
  $region105: #{tpu_custom_call.1} parent=0
    _
  %s19 = ssub.s32 1, %s17
  %s20 = scalar_select 0, %s19, %s17
  $region1: #{tpu_custom_call.1} parent=0
    #allocation5 [shape = 'u8[8192]{0}', space=vmem, size = 0x2000, scoped, tag = 'output window, operand 0']
    #allocation6 [shape = 's32[2]{0}', space=sflag, size = 0x8, scoped, tag = 'scoped memory for tpu_custom_call.1']
    %21 = vsyncpa [#allocation6], 0
    %s22 = scalar_lea.sflag [#allocation6], 1
    %23 = vsyncpa %s22, 0
    loop: start=0, step=1, limit=6
    $region2: #{tpu_custom_call.1} parent=1 // loop_pre_header
      _
    $region3: #{tpu_custom_call.1} parent=1 // loop_header
      %s25 = sphi 0, %s29
      %p26 = scmp.ge.s32.totalorder %s25, 6
      %s32 = sphi 0, %s44
      %s33 = sphi 0, %s40
      %s34 = sphi 0, %s32
      %s35 = sphi 0, %s33
      %s36 = sphi 0, %s34
      %s37 = sphi 0, %s35
      %s47 = sphi 0, %s49
      %s50 = sphi 0, %s47
      %s51 = sphi 0, %s50
      %s67 = sphi 0, %s51
      %s71 = sphi 0, %s71
      %s73 = sphi 0, %s71
      %s74 = sphi 0, %s73
      %s88 = sphi 0, %s74
      %s94 = sphi 0, %s96
      %s97 = sphi 0, %s94
      %s98 = sphi 0, %s97
      %s114 = sphi 0, %s98
      %s120 = sphi 0, %s122
      %s123 = sphi 0, %s120
      %s124 = sphi 0, %s123
      %s140 = sphi 0, %s124
      %s146 = sphi 0, %s148
      %s149 = sphi 0, %s146
      %s150 = sphi 0, %s149
      %s166 = sphi 0, %s150
      %s172 = sphi 0, %s174
      %s175 = sphi 0, %s172
      %s176 = sphi 0, %s175
      %s192 = sphi 0, %s176
      %s198 = sphi 0, %s200
      %s201 = sphi 0, %s198
      %s202 = sphi 0, %s201
      %s218 = sphi 0, %s202
      %s224 = sphi 0, %s226
      %s227 = sphi 0, %s224
      %s228 = sphi 0, %s227
      %s244 = sphi 0, %s228
      %s250 = sphi 0, %s252
      %s253 = sphi 0, %s250
      %s254 = sphi 0, %s253
      %s270 = sphi 0, %s254
      %s276 = sphi 0, %s278
      %s279 = sphi 0, %s276
      %s280 = sphi 0, %s279
      %s296 = sphi 0, %s280
      %s302 = sphi 0, %s304
      %s305 = sphi 0, %s302
      %s306 = sphi 0, %s305
      %s322 = sphi 0, %s306
      %s328 = sphi 0, %s330
      %s331 = sphi 0, %s328
      %s332 = sphi 0, %s331
      %s348 = sphi 0, %s332
      %s354 = sphi 0, %s356
      %s357 = sphi 0, %s354
      %s358 = sphi 0, %s357
      %s374 = sphi 0, %s358
      %s380 = sphi 0, %s382
      %s383 = sphi 0, %s380
      %s384 = sphi 0, %s383
      %s400 = sphi 0, %s384
      %s404 = sphi 0, %s404
      %s406 = sphi 0, %s404
      %s407 = sphi 0, %s406
      %s421 = sphi 0, %s407
      %s425 = sphi 0, %s425
      %s427 = sphi 0, %s425
      %s428 = sphi 0, %s427
      %s442 = sphi 0, %s428
      %s448 = sphi 0, %s450
      %s451 = sphi 0, %s448
      %s452 = sphi 0, %s451
      %s468 = sphi 0, %s452
    $region4: #{tpu_custom_call.1} parent=1 // loop_header_branch
      %28 = sbr.rel (%p26) target = $region8
    $region5: #{tpu_custom_call.1} parent=1 // loop_body
      %s30 = ssub.s32 %s25, 1
      %s31 = ssub.s32 %s25, 2
      %s38 = sadd.s32 1, %s33
      %p39 = scmp.ge.s32.totalorder %s38, 2
      %s40 = scalar_select %p39, 0, %s38
      %s41 = sadd.s32 1, %s32
      %s42 = scalar_select %p39, %s41, %s32
      %p43 = scmp.ge.s32.totalorder %s42, 2
      %s44 = scalar_select %p43, 0, %s42
      %s45 = ssub.s32 %s32, %s44
      %p46 = scmp.eq.s32.totalorder %s45, 0
      %s48 = sadd.s32 %s47, 1
      %s49 = scalar_select %p46, %s47, %s48
      %p52 = pneg %p46
      %p53 = scmp.eq.s32.totalorder %s25, 3
      %p54 = por %p52, %p53
      %p55 = scmp.ne.s32.totalorder %s47, %s50
      %p56 = scmp.eq.s32.totalorder %s25, 0
      %p57 = por %p55, %p56
      %p58 = scmp.ne.s32.totalorder %s47, %s50
      %p59 = scmp.eq.s32.totalorder %s30, 3
      %p60 = por %p58, %p59
      %p61 = scmp.ne.s32.totalorder %s50, %s51
      %p62 = scmp.eq.s32.totalorder %s30, 0
      %p63 = por %p61, %p62
      %p64 = scmp.ne.s32.totalorder %s50, %s51
      %p65 = scmp.eq.s32.totalorder %s31, 3
      %p66 = por %p64, %p65
      %p68 = scmp.ne.s32.totalorder %s51, %s67
      %p69 = scmp.eq.s32.totalorder %s31, 0
      %p70 = por %p68, %p69
      %s72 = sadd.s32 %s71, 1
      %p75 = scmp.eq.s32.totalorder %s25, 3
      %p76 = scmp.ne.s32.totalorder %s71, %s73
      %p77 = scmp.eq.s32.totalorder %s25, 0
      %p78 = por %p76, %p77
      %p79 = scmp.ne.s32.totalorder %s71, %s73
      %p80 = scmp.eq.s32.totalorder %s30, 3
      %p81 = por %p79, %p80
      %p82 = scmp.ne.s32.totalorder %s73, %s74
      %p83 = scmp.eq.s32.totalorder %s30, 0
      %p84 = por %p82, %p83
      %p85 = scmp.ne.s32.totalorder %s73, %s74
      %p86 = scmp.eq.s32.totalorder %s31, 3
      %p87 = por %p85, %p86
      %p89 = scmp.ne.s32.totalorder %s74, %s88
      %p90 = scmp.eq.s32.totalorder %s31, 0
      %p91 = por %p89, %p90
      %s92 = ssub.s32 %s33, %s40
      %p93 = scmp.eq.s32.totalorder %s92, 0
      %s95 = sadd.s32 %s94, 1
      %s96 = scalar_select %p93, %s94, %s95
      %p99 = pneg %p93
      %p100 = scmp.eq.s32.totalorder %s25, 3
      %p101 = por %p99, %p100
      %p102 = scmp.ne.s32.totalorder %s94, %s97
      %p103 = scmp.eq.s32.totalorder %s25, 0
      %p104 = por %p102, %p103
      %p105 = scmp.ne.s32.totalorder %s94, %s97
      %p106 = scmp.eq.s32.totalorder %s30, 3
      %p107 = por %p105, %p106
      %p108 = scmp.ne.s32.totalorder %s97, %s98
      %p109 = scmp.eq.s32.totalorder %s30, 0
      %p110 = por %p108, %p109
      %p111 = scmp.ne.s32.totalorder %s97, %s98
      %p112 = scmp.eq.s32.totalorder %s31, 3
      %p113 = por %p111, %p112
      %p115 = scmp.ne.s32.totalorder %s98, %s114
      %p116 = scmp.eq.s32.totalorder %s31, 0
      %p117 = por %p115, %p116
      %s118 = ssub.s32 %s33, %s40
      %p119 = scmp.eq.s32.totalorder %s118, 0
      %s121 = sadd.s32 %s120, 1
      %s122 = scalar_select %p119, %s120, %s121
      %p125 = pneg %p119
      %p126 = scmp.eq.s32.totalorder %s25, 3
      %p127 = por %p125, %p126
      %p128 = scmp.ne.s32.totalorder %s120, %s123
      %p129 = scmp.eq.s32.totalorder %s25, 0
      %p130 = por %p128, %p129
      %p131 = scmp.ne.s32.totalorder %s120, %s123
      %p132 = scmp.eq.s32.totalorder %s30, 3
      %p133 = por %p131, %p132
      %p134 = scmp.ne.s32.totalorder %s123, %s124
      %p135 = scmp.eq.s32.totalorder %s30, 0
      %p136 = por %p134, %p135
      %p137 = scmp.ne.s32.totalorder %s123, %s124
      %p138 = scmp.eq.s32.totalorder %s31, 3
      %p139 = por %p137, %p138
      %p141 = scmp.ne.s32.totalorder %s124, %s140
      %p142 = scmp.eq.s32.totalorder %s31, 0
      %p143 = por %p141, %p142
      %s144 = ssub.s32 %s33, %s40
      %p145 = scmp.eq.s32.totalorder %s144, 0
      %s147 = sadd.s32 %s146, 1
      %s148 = scalar_select %p145, %s146, %s147
      %p151 = pneg %p145
      %p152 = scmp.eq.s32.totalorder %s25, 3
      %p153 = por %p151, %p152
      %p154 = scmp.ne.s32.totalorder %s146, %s149
      %p155 = scmp.eq.s32.totalorder %s25, 0
      %p156 = por %p154, %p155
      %p157 = scmp.ne.s32.totalorder %s146, %s149
      %p158 = scmp.eq.s32.totalorder %s30, 3
      %p159 = por %p157, %p158
      %p160 = scmp.ne.s32.totalorder %s149, %s150
      %p161 = scmp.eq.s32.totalorder %s30, 0
      %p162 = por %p160, %p161
      %p163 = scmp.ne.s32.totalorder %s149, %s150
      %p164 = scmp.eq.s32.totalorder %s31, 3
      %p165 = por %p163, %p164
      %p167 = scmp.ne.s32.totalorder %s150, %s166
      %p168 = scmp.eq.s32.totalorder %s31, 0
      %p169 = por %p167, %p168
      %s170 = ssub.s32 %s33, %s40
      %p171 = scmp.eq.s32.totalorder %s170, 0
      %s173 = sadd.s32 %s172, 1
      %s174 = scalar_select %p171, %s172, %s173
      %p177 = pneg %p171
      %p178 = scmp.eq.s32.totalorder %s25, 3
      %p179 = por %p177, %p178
      %p180 = scmp.ne.s32.totalorder %s172, %s175
      %p181 = scmp.eq.s32.totalorder %s25, 0
      %p182 = por %p180, %p181
      %p183 = scmp.ne.s32.totalorder %s172, %s175
      %p184 = scmp.eq.s32.totalorder %s30, 3
      %p185 = por %p183, %p184
      %p186 = scmp.ne.s32.totalorder %s175, %s176
      %p187 = scmp.eq.s32.totalorder %s30, 0
      %p188 = por %p186, %p187
      %p189 = scmp.ne.s32.totalorder %s175, %s176
      %p190 = scmp.eq.s32.totalorder %s31, 3
      %p191 = por %p189, %p190
      %p193 = scmp.ne.s32.totalorder %s176, %s192
      %p194 = scmp.eq.s32.totalorder %s31, 0
      %p195 = por %p193, %p194
      %s196 = ssub.s32 %s33, %s40
      %p197 = scmp.eq.s32.totalorder %s196, 0
      %s199 = sadd.s32 %s198, 1
      %s200 = scalar_select %p197, %s198, %s199
      %p203 = pneg %p197
      %p204 = scmp.eq.s32.totalorder %s25, 3
      %p205 = por %p203, %p204
      %p206 = scmp.ne.s32.totalorder %s198, %s201
      %p207 = scmp.eq.s32.totalorder %s25, 0
      %p208 = por %p206, %p207
      %p209 = scmp.ne.s32.totalorder %s198, %s201
      %p210 = scmp.eq.s32.totalorder %s30, 3
      %p211 = por %p209, %p210
      %p212 = scmp.ne.s32.totalorder %s201, %s202
      %p213 = scmp.eq.s32.totalorder %s30, 0
      %p214 = por %p212, %p213
      %p215 = scmp.ne.s32.totalorder %s201, %s202
      %p216 = scmp.eq.s32.totalorder %s31, 3
      %p217 = por %p215, %p216
      %p219 = scmp.ne.s32.totalorder %s202, %s218
      %p220 = scmp.eq.s32.totalorder %s31, 0
      %p221 = por %p219, %p220
      %s222 = ssub.s32 %s33, %s40
      %p223 = scmp.eq.s32.totalorder %s222, 0
      %s225 = sadd.s32 %s224, 1
      %s226 = scalar_select %p223, %s224, %s225
      %p229 = pneg %p223
      %p230 = scmp.eq.s32.totalorder %s25, 3
      %p231 = por %p229, %p230
      %p232 = scmp.ne.s32.totalorder %s224, %s227
      %p233 = scmp.eq.s32.totalorder %s25, 0
      %p234 = por %p232, %p233
      %p235 = scmp.ne.s32.totalorder %s224, %s227
      %p236 = scmp.eq.s32.totalorder %s30, 3
      %p237 = por %p235, %p236
      %p238 = scmp.ne.s32.totalorder %s227, %s228
      %p239 = scmp.eq.s32.totalorder %s30, 0
      %p240 = por %p238, %p239
      %p241 = scmp.ne.s32.totalorder %s227, %s228
      %p242 = scmp.eq.s32.totalorder %s31, 3
      %p243 = por %p241, %p242
      %p245 = scmp.ne.s32.totalorder %s228, %s244
      %p246 = scmp.eq.s32.totalorder %s31, 0
      %p247 = por %p245, %p246
      %s248 = ssub.s32 %s33, %s40
      %p249 = scmp.eq.s32.totalorder %s248, 0
      %s251 = sadd.s32 %s250, 1
      %s252 = scalar_select %p249, %s250, %s251
      %p255 = pneg %p249
      %p256 = scmp.eq.s32.totalorder %s25, 3
      %p257 = por %p255, %p256
      %p258 = scmp.ne.s32.totalorder %s250, %s253
      %p259 = scmp.eq.s32.totalorder %s25, 0
      %p260 = por %p258, %p259
      %p261 = scmp.ne.s32.totalorder %s250, %s253
      %p262 = scmp.eq.s32.totalorder %s30, 3
      %p263 = por %p261, %p262
      %p264 = scmp.ne.s32.totalorder %s253, %s254
      %p265 = scmp.eq.s32.totalorder %s30, 0
      %p266 = por %p264, %p265
      %p267 = scmp.ne.s32.totalorder %s253, %s254
      %p268 = scmp.eq.s32.totalorder %s31, 3
      %p269 = por %p267, %p268
      %p271 = scmp.ne.s32.totalorder %s254, %s270
      %p272 = scmp.eq.s32.totalorder %s31, 0
      %p273 = por %p271, %p272
      %s274 = ssub.s32 %s33, %s40
      %p275 = scmp.eq.s32.totalorder %s274, 0
      %s277 = sadd.s32 %s276, 1
      %s278 = scalar_select %p275, %s276, %s277
      %p281 = pneg %p275
      %p282 = scmp.eq.s32.totalorder %s25, 3
      %p283 = por %p281, %p282
      %p284 = scmp.ne.s32.totalorder %s276, %s279
      %p285 = scmp.eq.s32.totalorder %s25, 0
      %p286 = por %p284, %p285
      %p287 = scmp.ne.s32.totalorder %s276, %s279
      %p288 = scmp.eq.s32.totalorder %s30, 3
      %p289 = por %p287, %p288
      %p290 = scmp.ne.s32.totalorder %s279, %s280
      %p291 = scmp.eq.s32.totalorder %s30, 0
      %p292 = por %p290, %p291
      %p293 = scmp.ne.s32.totalorder %s279, %s280
      %p294 = scmp.eq.s32.totalorder %s31, 3
      %p295 = por %p293, %p294
      %p297 = scmp.ne.s32.totalorder %s280, %s296
      %p298 = scmp.eq.s32.totalorder %s31, 0
      %p299 = por %p297, %p298
      %s300 = ssub.s32 %s33, %s40
      %p301 = scmp.eq.s32.totalorder %s300, 0
      %s303 = sadd.s32 %s302, 1
      %s304 = scalar_select %p301, %s302, %s303
      %p307 = pneg %p301
      %p308 = scmp.eq.s32.totalorder %s25, 3
      %p309 = por %p307, %p308
      %p310 = scmp.ne.s32.totalorder %s302, %s305
      %p311 = scmp.eq.s32.totalorder %s25, 0
      %p312 = por %p310, %p311
      %p313 = scmp.ne.s32.totalorder %s302, %s305
      %p314 = scmp.eq.s32.totalorder %s30, 3
      %p315 = por %p313, %p314
      %p316 = scmp.ne.s32.totalorder %s305, %s306
      %p317 = scmp.eq.s32.totalorder %s30, 0
      %p318 = por %p316, %p317
      %p319 = scmp.ne.s32.totalorder %s305, %s306
      %p320 = scmp.eq.s32.totalorder %s31, 3
      %p321 = por %p319, %p320
      %p323 = scmp.ne.s32.totalorder %s306, %s322
      %p324 = scmp.eq.s32.totalorder %s31, 0
      %p325 = por %p323, %p324
      %s326 = ssub.s32 %s33, %s40
      %p327 = scmp.eq.s32.totalorder %s326, 0
      %s329 = sadd.s32 %s328, 1
      %s330 = scalar_select %p327, %s328, %s329
      %p333 = pneg %p327
      %p334 = scmp.eq.s32.totalorder %s25, 3
      %p335 = por %p333, %p334
      %p336 = scmp.ne.s32.totalorder %s328, %s331
      %p337 = scmp.eq.s32.totalorder %s25, 0
      %p338 = por %p336, %p337
      %p339 = scmp.ne.s32.totalorder %s328, %s331
      %p340 = scmp.eq.s32.totalorder %s30, 3
      %p341 = por %p339, %p340
      %p342 = scmp.ne.s32.totalorder %s331, %s332
      %p343 = scmp.eq.s32.totalorder %s30, 0
      %p344 = por %p342, %p343
      %p345 = scmp.ne.s32.totalorder %s331, %s332
      %p346 = scmp.eq.s32.totalorder %s31, 3
      %p347 = por %p345, %p346
      %p349 = scmp.ne.s32.totalorder %s332, %s348
      %p350 = scmp.eq.s32.totalorder %s31, 0
      %p351 = por %p349, %p350
      %s352 = ssub.s32 %s33, %s40
      %p353 = scmp.eq.s32.totalorder %s352, 0
      %s355 = sadd.s32 %s354, 1
      %s356 = scalar_select %p353, %s354, %s355
      %p359 = pneg %p353
      %p360 = scmp.eq.s32.totalorder %s25, 3
      %p361 = por %p359, %p360
      %p362 = scmp.ne.s32.totalorder %s354, %s357
      %p363 = scmp.eq.s32.totalorder %s25, 0
      %p364 = por %p362, %p363
      %p365 = scmp.ne.s32.totalorder %s354, %s357
      %p366 = scmp.eq.s32.totalorder %s30, 3
      %p367 = por %p365, %p366
      %p368 = scmp.ne.s32.totalorder %s357, %s358
      %p369 = scmp.eq.s32.totalorder %s30, 0
      %p370 = por %p368, %p369
      %p371 = scmp.ne.s32.totalorder %s357, %s358
      %p372 = scmp.eq.s32.totalorder %s31, 3
      %p373 = por %p371, %p372
      %p375 = scmp.ne.s32.totalorder %s358, %s374
      %p376 = scmp.eq.s32.totalorder %s31, 0
      %p377 = por %p375, %p376
      %s378 = ssub.s32 %s33, %s40
      %p379 = scmp.eq.s32.totalorder %s378, 0
      %s381 = sadd.s32 %s380, 1
      %s382 = scalar_select %p379, %s380, %s381
      %p385 = pneg %p379
      %p386 = scmp.eq.s32.totalorder %s25, 3
      %p387 = por %p385, %p386
      %p388 = scmp.ne.s32.totalorder %s380, %s383
      %p389 = scmp.eq.s32.totalorder %s25, 0
      %p390 = por %p388, %p389
      %p391 = scmp.ne.s32.totalorder %s380, %s383
      %p392 = scmp.eq.s32.totalorder %s30, 3
      %p393 = por %p391, %p392
      %p394 = scmp.ne.s32.totalorder %s383, %s384
      %p395 = scmp.eq.s32.totalorder %s30, 0
      %p396 = por %p394, %p395
      %p397 = scmp.ne.s32.totalorder %s383, %s384
      %p398 = scmp.eq.s32.totalorder %s31, 3
      %p399 = por %p397, %p398
      %p401 = scmp.ne.s32.totalorder %s384, %s400
      %p402 = scmp.eq.s32.totalorder %s31, 0
      %p403 = por %p401, %p402
      %s405 = sadd.s32 %s404, 1
      %p408 = scmp.eq.s32.totalorder %s25, 3
      %p409 = scmp.ne.s32.totalorder %s404, %s406
      %p410 = scmp.eq.s32.totalorder %s25, 0
      %p411 = por %p409, %p410
      %p412 = scmp.ne.s32.totalorder %s404, %s406
      %p413 = scmp.eq.s32.totalorder %s30, 3
      %p414 = por %p412, %p413
      %p415 = scmp.ne.s32.totalorder %s406, %s407
      %p416 = scmp.eq.s32.totalorder %s30, 0
      %p417 = por %p415, %p416
      %p418 = scmp.ne.s32.totalorder %s406, %s407
      %p419 = scmp.eq.s32.totalorder %s31, 3
      %p420 = por %p418, %p419
      %p422 = scmp.ne.s32.totalorder %s407, %s421
      %p423 = scmp.eq.s32.totalorder %s31, 0
      %p424 = por %p422, %p423
      %s426 = sadd.s32 %s425, 1
      %p429 = scmp.eq.s32.totalorder %s25, 3
      %p430 = scmp.ne.s32.totalorder %s425, %s427
      %p431 = scmp.eq.s32.totalorder %s25, 0
      %p432 = por %p430, %p431
      %p433 = scmp.ne.s32.totalorder %s425, %s427
      %p434 = scmp.eq.s32.totalorder %s30, 3
      %p435 = por %p433, %p434
      %p436 = scmp.ne.s32.totalorder %s427, %s428
      %p437 = scmp.eq.s32.totalorder %s30, 0
      %p438 = por %p436, %p437
      %p439 = scmp.ne.s32.totalorder %s427, %s428
      %p440 = scmp.eq.s32.totalorder %s31, 3
      %p441 = por %p439, %p440
      %p443 = scmp.ne.s32.totalorder %s428, %s442
      %p444 = scmp.eq.s32.totalorder %s31, 0
      %p445 = por %p443, %p444
      %s446 = ssub.s32 %s32, %s44
      %p447 = scmp.eq.s32.totalorder %s446, 0
      %s449 = sadd.s32 %s448, 1
      %s450 = scalar_select %p447, %s448, %s449
      %p453 = pneg %p447
      %p454 = scmp.eq.s32.totalorder %s25, 3
      %p455 = por %p453, %p454
      %p456 = scmp.ne.s32.totalorder %s448, %s451
      %p457 = scmp.eq.s32.totalorder %s25, 0
      %p458 = por %p456, %p457
      %p459 = scmp.ne.s32.totalorder %s448, %s451
      %p460 = scmp.eq.s32.totalorder %s30, 3
      %p461 = por %p459, %p460
      %p462 = scmp.ne.s32.totalorder %s451, %s452
      %p463 = scmp.eq.s32.totalorder %s30, 0
      %p464 = por %p462, %p463
      %p465 = scmp.ne.s32.totalorder %s451, %s452
      %p466 = scmp.eq.s32.totalorder %s31, 3
      %p467 = por %p465, %p466
      %p469 = scmp.ne.s32.totalorder %s452, %s468
      %p470 = scmp.eq.s32.totalorder %s31, 0
      %p471 = por %p469, %p470
      %p472 = scmp.le.s32.totalorder 1, %s25
      %p473 = scmp.lt.s32.totalorder %s25, 5
      %p474 = pnand %p472, %p473
      %p475 = pneg %p474
      // Predicated region
      $region9: #{tpu_custom_call.1} parent=5 // pred_check
        _
      $region10: #{tpu_custom_call.1} parent=5 // pred_check_branch
        %477 = sbr.rel (%p474) target = $region12
      $region11: #{tpu_custom_call.1} parent=5 // pred_region
        %s478 = ssub.s32 %s25, 1
        // Predicated region
        $region13: #{tpu_custom_call.1} parent=11 // pred_check
          %p479 = pneg %p84
        $region14: #{tpu_custom_call.1} parent=11 // pred_check_branch
          %481 = sbr.rel (%p479) target = $region16
        $region15: #{tpu_custom_call.1} parent=11 // pred_region
          _
        $region16: #{tpu_custom_call.1} parent=11 // pred_fallthru
          _
        // Predicated region
        $region17: #{tpu_custom_call.1} parent=11 // pred_check
          %p482 = pneg %p417
        $region18: #{tpu_custom_call.1} parent=11 // pred_check_branch
          %484 = sbr.rel (%p482) target = $region20
        $region19: #{tpu_custom_call.1} parent=11 // pred_region
          _
        $region20: #{tpu_custom_call.1} parent=11 // pred_fallthru
          _
        // Predicated region
        $region21: #{tpu_custom_call.1} parent=11 // pred_check
          %p485 = pneg %p438
        $region22: #{tpu_custom_call.1} parent=11 // pred_check_branch
          %487 = sbr.rel (%p485) target = $region24
        $region23: #{tpu_custom_call.1} parent=11 // pred_region
          _
        $region24: #{tpu_custom_call.1} parent=11 // pred_fallthru
          _
      $region12: #{tpu_custom_call.1} parent=5 // pred_fallthru
        _
      %p488 = scmp.lt.s32.totalorder %s25, 4
      // Predicated region
      $region25: #{tpu_custom_call.1} parent=5 // pred_check
        %p489 = pneg %p488
      $region26: #{tpu_custom_call.1} parent=5 // pred_check_branch
        %491 = sbr.rel (%p489) target = $region28
      $region27: #{tpu_custom_call.1} parent=5 // pred_region
        // Predicated region
        $region29: #{tpu_custom_call.1} parent=27 // pred_check
          %p492 = pneg %p57
        $region30: #{tpu_custom_call.1} parent=27 // pred_check_branch
          %494 = sbr.rel (%p492) target = $region32
        $region31: #{tpu_custom_call.1} parent=27 // pred_region
          %p495 = scmp.lt.s32.totalorder %s32, 1
          %s496 = scalar_select %p495, %s32, 1
          %s497 = smul.addr %s496, 8
          %s498 = scalar_lea.vmem %s0, %s497
        $region32: #{tpu_custom_call.1} parent=27 // pred_fallthru
          _
        // Predicated region
        $region33: #{tpu_custom_call.1} parent=27 // pred_check
          %p499 = pneg %p104
        $region34: #{tpu_custom_call.1} parent=27 // pred_check_branch
          %501 = sbr.rel (%p499) target = $region36
        $region35: #{tpu_custom_call.1} parent=27 // pred_region
          %p502 = scmp.lt.s32.totalorder %s33, 1
          %s503 = scalar_select %p502, %s33, 1
          %s504 = scalar_lea.vmem %s2, %s503
        $region36: #{tpu_custom_call.1} parent=27 // pred_fallthru
          _
        // Predicated region
        $region37: #{tpu_custom_call.1} parent=27 // pred_check
          %p505 = pneg %p130
        $region38: #{tpu_custom_call.1} parent=27 // pred_check_branch
          %507 = sbr.rel (%p505) target = $region40
        $region39: #{tpu_custom_call.1} parent=27 // pred_region
          %p508 = scmp.lt.s32.totalorder %s33, 1
          %s509 = scalar_select %p508, %s33, 1
          %s510 = scalar_lea.vmem %s3, %s509
        $region40: #{tpu_custom_call.1} parent=27 // pred_fallthru
          _
        // Predicated region
        $region41: #{tpu_custom_call.1} parent=27 // pred_check
          %p511 = pneg %p156
        $region42: #{tpu_custom_call.1} parent=27 // pred_check_branch
          %513 = sbr.rel (%p511) target = $region44
        $region43: #{tpu_custom_call.1} parent=27 // pred_region
          %p514 = scmp.lt.s32.totalorder %s33, 1
          %s515 = scalar_select %p514, %s33, 1
          %s516 = smul.addr %s515, 4
          %s517 = smul.addr %s516, 4
          %s518 = scalar_lea.vmem %s4, %s517
        $region44: #{tpu_custom_call.1} parent=27 // pred_fallthru
          _
        // Predicated region
        $region45: #{tpu_custom_call.1} parent=27 // pred_check
          %p519 = pneg %p182
        $region46: #{tpu_custom_call.1} parent=27 // pred_check_branch
          %521 = sbr.rel (%p519) target = $region48
        $region47: #{tpu_custom_call.1} parent=27 // pred_region
          %p522 = scmp.lt.s32.totalorder %s33, 1
          %s523 = scalar_select %p522, %s33, 1
          %s524 = scalar_lea.vmem %s5, %s523
        $region48: #{tpu_custom_call.1} parent=27 // pred_fallthru
          _
        // Predicated region
        $region49: #{tpu_custom_call.1} parent=27 // pred_check
          %p525 = pneg %p208
        $region50: #{tpu_custom_call.1} parent=27 // pred_check_branch
          %527 = sbr.rel (%p525) target = $region52
        $region51: #{tpu_custom_call.1} parent=27 // pred_region
          %p528 = scmp.lt.s32.totalorder %s33, 1
          %s529 = scalar_select %p528, %s33, 1
          %s530 = smul.addr %s529, 4
          %s531 = smul.addr %s530, 4
          %s532 = scalar_lea.vmem %s6, %s531
        $region52: #{tpu_custom_call.1} parent=27 // pred_fallthru
          _
        // Predicated region
        $region53: #{tpu_custom_call.1} parent=27 // pred_check
          %p533 = pneg %p234
        $region54: #{tpu_custom_call.1} parent=27 // pred_check_branch
          %535 = sbr.rel (%p533) target = $region56
        $region55: #{tpu_custom_call.1} parent=27 // pred_region
          %p536 = scmp.lt.s32.totalorder %s33, 1
          %s537 = scalar_select %p536, %s33, 1
          %s538 = scalar_lea.vmem %s7, %s537
        $region56: #{tpu_custom_call.1} parent=27 // pred_fallthru
          _
        // Predicated region
        $region57: #{tpu_custom_call.1} parent=27 // pred_check
          %p539 = pneg %p260
        $region58: #{tpu_custom_call.1} parent=27 // pred_check_branch
          %541 = sbr.rel (%p539) target = $region60
        $region59: #{tpu_custom_call.1} parent=27 // pred_region
          %p542 = scmp.lt.s32.totalorder %s33, 1
          %s543 = scalar_select %p542, %s33, 1
          %s544 = scalar_lea.vmem %s8, %s543
        $region60: #{tpu_custom_call.1} parent=27 // pred_fallthru
          _
        // Predicated region
        $region61: #{tpu_custom_call.1} parent=27 // pred_check
          %p545 = pneg %p286
        $region62: #{tpu_custom_call.1} parent=27 // pred_check_branch
          %547 = sbr.rel (%p545) target = $region64
        $region63: #{tpu_custom_call.1} parent=27 // pred_region
          %p548 = scmp.lt.s32.totalorder %s33, 1
          %s549 = scalar_select %p548, %s33, 1
          %s550 = scalar_lea.vmem %s9, %s549
        $region64: #{tpu_custom_call.1} parent=27 // pred_fallthru
          _
        // Predicated region
        $region65: #{tpu_custom_call.1} parent=27 // pred_check
          %p551 = pneg %p312
        $region66: #{tpu_custom_call.1} parent=27 // pred_check_branch
          %553 = sbr.rel (%p551) target = $region68
        $region67: #{tpu_custom_call.1} parent=27 // pred_region
          %p554 = scmp.lt.s32.totalorder %s33, 1
          %s555 = scalar_select %p554, %s33, 1
          %s556 = smul.addr %s555, 4
          %s557 = smul.addr %s556, 4
          %s558 = scalar_lea.vmem %s10, %s557
        $region68: #{tpu_custom_call.1} parent=27 // pred_fallthru
          _
        // Predicated region
        $region69: #{tpu_custom_call.1} parent=27 // pred_check
          %p559 = pneg %p338
        $region70: #{tpu_custom_call.1} parent=27 // pred_check_branch
          %561 = sbr.rel (%p559) target = $region72
        $region71: #{tpu_custom_call.1} parent=27 // pred_region
          %p562 = scmp.lt.s32.totalorder %s33, 1
          %s563 = scalar_select %p562, %s33, 1
          %s564 = scalar_lea.vmem %s11, %s563
        $region72: #{tpu_custom_call.1} parent=27 // pred_fallthru
          _
        // Predicated region
        $region73: #{tpu_custom_call.1} parent=27 // pred_check
          %p565 = pneg %p364
        $region74: #{tpu_custom_call.1} parent=27 // pred_check_branch
          %567 = sbr.rel (%p565) target = $region76
        $region75: #{tpu_custom_call.1} parent=27 // pred_region
          %p568 = scmp.lt.s32.totalorder %s33, 1
          %s569 = scalar_select %p568, %s33, 1
          %s570 = smul.addr %s569, 16
          %s571 = smul.addr %s570, 4
          %s572 = scalar_lea.vmem %s12, %s571
        $region76: #{tpu_custom_call.1} parent=27 // pred_fallthru
          _
        // Predicated region
        $region77: #{tpu_custom_call.1} parent=27 // pred_check
          %p573 = pneg %p390
        $region78: #{tpu_custom_call.1} parent=27 // pred_check_branch
          %575 = sbr.rel (%p573) target = $region80
        $region79: #{tpu_custom_call.1} parent=27 // pred_region
          %p576 = scmp.lt.s32.totalorder %s33, 1
          %s577 = scalar_select %p576, %s33, 1
          %s578 = scalar_lea.vmem %s13, %s577
        $region80: #{tpu_custom_call.1} parent=27 // pred_fallthru
          _
      $region28: #{tpu_custom_call.1} parent=5 // pred_fallthru
        _
      %p579 = scmp.le.s32.totalorder 1, %s25
      %p580 = scmp.lt.s32.totalorder %s25, 5
      %p581 = pnand %p579, %p580
      %p582 = pneg %p581
      // Predicated region
      $region81: #{tpu_custom_call.1} parent=5 // pred_check
        _
      $region82: #{tpu_custom_call.1} parent=5 // pred_check_branch
        %584 = sbr.rel (%p581) target = $region84
      $region83: #{tpu_custom_call.1} parent=5 // pred_region
        %s585 = ssub.s32 %s25, 1
        %p586 = scmp.lt.s32.totalorder %s34, 1
        %s587 = scalar_select %p586, %s34, 1
        %s588 = smul.addr %s587, 8
        %s589 = scalar_lea.vmem %s0, %s588
        %p590 = pneg %p63
        %p591 = pneg %p60
        %p592 = pneg %p84
        %p593 = pneg %p81
        %p594 = scmp.lt.s32.totalorder %s35, 1
        %s595 = scalar_select %p594, %s35, 1
        %s596 = scalar_lea.vmem %s2, %s595
        %p597 = pneg %p110
        %p598 = pneg %p107
        %p599 = scmp.lt.s32.totalorder %s35, 1
        %s600 = scalar_select %p599, %s35, 1
        %s601 = scalar_lea.vmem %s3, %s600
        %p602 = pneg %p136
        %p603 = pneg %p133
        %p604 = scmp.lt.s32.totalorder %s35, 1
        %s605 = scalar_select %p604, %s35, 1
        %s606 = smul.addr %s605, 4
        %s607 = smul.addr %s606, 4
        %s608 = scalar_lea.vmem %s4, %s607
        %p609 = pneg %p162
        %p610 = pneg %p159
        %p611 = scmp.lt.s32.totalorder %s35, 1
        %s612 = scalar_select %p611, %s35, 1
        %s613 = scalar_lea.vmem %s5, %s612
        %p614 = pneg %p188
        %p615 = pneg %p185
        %p616 = scmp.lt.s32.totalorder %s35, 1
        %s617 = scalar_select %p616, %s35, 1
        %s618 = smul.addr %s617, 4
        %s619 = smul.addr %s618, 4
        %s620 = scalar_lea.vmem %s6, %s619
        %p621 = pneg %p214
        %p622 = pneg %p211
        %p623 = scmp.lt.s32.totalorder %s35, 1
        %s624 = scalar_select %p623, %s35, 1
        %s625 = scalar_lea.vmem %s7, %s624
        %p626 = pneg %p240
        %p627 = pneg %p237
        %p628 = scmp.lt.s32.totalorder %s35, 1
        %s629 = scalar_select %p628, %s35, 1
        %s630 = scalar_lea.vmem %s8, %s629
        %p631 = pneg %p266
        %p632 = pneg %p263
        %p633 = scmp.lt.s32.totalorder %s35, 1
        %s634 = scalar_select %p633, %s35, 1
        %s635 = scalar_lea.vmem %s9, %s634
        %p636 = pneg %p292
        %p637 = pneg %p289
        %p638 = scmp.lt.s32.totalorder %s35, 1
        %s639 = scalar_select %p638, %s35, 1
        %s640 = smul.addr %s639, 4
        %s641 = smul.addr %s640, 4
        %s642 = scalar_lea.vmem %s10, %s641
        %p643 = pneg %p318
        %p644 = pneg %p315
        %p645 = scmp.lt.s32.totalorder %s35, 1
        %s646 = scalar_select %p645, %s35, 1
        %s647 = scalar_lea.vmem %s11, %s646
        %p648 = pneg %p344
        %p649 = pneg %p341
        %p650 = scmp.lt.s32.totalorder %s35, 1
        %s651 = scalar_select %p650, %s35, 1
        %s652 = smul.addr %s651, 16
        %s653 = smul.addr %s652, 4
        %s654 = scalar_lea.vmem %s12, %s653
        %p655 = pneg %p370
        %p656 = pneg %p367
        %p657 = scmp.lt.s32.totalorder %s35, 1
        %s658 = scalar_select %p657, %s35, 1
        %s659 = scalar_lea.vmem %s13, %s658
        %p660 = pneg %p396
        %p661 = pneg %p393
        %p662 = pneg %p417
        %p663 = pneg %p414
        %p664 = pneg %p438
        %p665 = pneg %p435
        %p666 = pneg %p464
        %p667 = pneg %p461
        %s668 = sand.u32 %s451, 1
        %s669 = scalar_lea.sflag [#allocation6], %s668
        %s670 = sand.u32 %s451, 1
        %s671 = smul.addr %s670, 8
        %s672 = scalar_lea.vmem [#allocation5], %s671
        %p673 = scmp.lt.s32.totalorder %s34, 1
        %s674 = scalar_select %p673, %s34, 1
        %s675 = smul.addr %s674, 8
        %s676 = scalar_lea.vmem %s0, %s675
        %p677 = scmp.lt.s32.totalorder %s35, 1
        %s678 = scalar_select %p677, %s35, 1
        %s679 = scalar_lea.vmem %s2, %s678
        %p680 = scmp.lt.s32.totalorder %s35, 1
        %s681 = scalar_select %p680, %s35, 1
        %s682 = scalar_lea.vmem %s3, %s681
        %p683 = scmp.lt.s32.totalorder %s35, 1
        %s684 = scalar_select %p683, %s35, 1
        %s685 = smul.addr %s684, 4
        %s686 = smul.addr %s685, 4
        %s687 = scalar_lea.vmem %s4, %s686
        %p688 = scmp.lt.s32.totalorder %s35, 1
        %s689 = scalar_select %p688, %s35, 1
        %s690 = scalar_lea.vmem %s5, %s689
        %p691 = scmp.lt.s32.totalorder %s35, 1
        %s692 = scalar_select %p691, %s35, 1
        %s693 = smul.addr %s692, 4
        %s694 = smul.addr %s693, 4
        %s695 = scalar_lea.vmem %s6, %s694
        %p696 = scmp.lt.s32.totalorder %s35, 1
        %s697 = scalar_select %p696, %s35, 1
        %s698 = scalar_lea.vmem %s7, %s697
        %p699 = scmp.lt.s32.totalorder %s35, 1
        %s700 = scalar_select %p699, %s35, 1
        %s701 = scalar_lea.vmem %s8, %s700
        %p702 = scmp.lt.s32.totalorder %s35, 1
        %s703 = scalar_select %p702, %s35, 1
        %s704 = scalar_lea.vmem %s9, %s703
        %p705 = scmp.lt.s32.totalorder %s35, 1
        %s706 = scalar_select %p705, %s35, 1
        %s707 = smul.addr %s706, 4
        %s708 = smul.addr %s707, 4
        %s709 = scalar_lea.vmem %s10, %s708
        %p710 = scmp.lt.s32.totalorder %s35, 1
        %s711 = scalar_select %p710, %s35, 1
        %s712 = scalar_lea.vmem %s11, %s711
        %p713 = scmp.lt.s32.totalorder %s35, 1
        %s714 = scalar_select %p713, %s35, 1
        %s715 = smul.addr %s714, 16
        %s716 = smul.addr %s715, 4
        %s717 = scalar_lea.vmem %s12, %s716
        %p718 = scmp.lt.s32.totalorder %s35, 1
        %s719 = scalar_select %p718, %s35, 1
        %s720 = scalar_lea.vmem %s13, %s719
        %p722 = scmp.eq.s32.totalorder %s35, 0
        // Predicated region
        $region85: #{tpu_custom_call.1} parent=83 // pred_check
          %p723 = pneg %p722
        $region86: #{tpu_custom_call.1} parent=83 // pred_check_branch
          %725 = sbr.rel (%p723) target = $region88
        $region87: #{tpu_custom_call.1} parent=83 // pred_region
          %v726 = vld [vmem:[%s676] sm:$0xff]
          %v727 = vlaneseq
          %v728 = vand.u32 %v727, 127
          %729 = vset.pattern.permute.xlu0 0
          %730 = vperm.xlu0 %729, %v726
          %v731 = vpop.permute.xlu0 %730
          %vm732 = vcmp.eq.s32.totalorder %v728, %v731
          %v733 = vsel %vm732, 1, 0
          %v734 = vcvt.s32.f32 %v733
          %v735 = vpack.c.bf16 %v734, %v734
          %v736 = vld [vmem:[%s1] sm:$0xf]
          %vm737 = vcmask 64512
          %v739 = vsel %vm737, %v735, 0
          %vm741 = vcmask 1043456
          %v743 = vsel %vm741, %v736, 0
          %745 = vmatprep.subr.bf16.mxu0 0
          %746 = vmatpush1.bf16.msra.mxu0 %v743
          %747 = vmatprep.subr.bf16.mxu0 0
          %748 = vmatpush1.bf16.msra.mxu0 0
          %749 = vmatprep.subr.bf16.mxu0 0
          %750 = vmatpush1.bf16.msra.mxu0 0
          %751 = vmatprep.subr.bf16.mxu0 0
          %752 = vmatpush1.bf16.msra.mxu0 0
          %753 = vmatprep.subr.bf16.mxu0 0
          %754 = vmatpush1.bf16.msra.mxu0 0
          %755 = vmatprep.subr.bf16.mxu0 0
          %756 = vmatpush1.bf16.msra.mxu0 0
          %757 = vmatprep.subr.bf16.mxu0 0
          %758 = vmatpush1.bf16.msra.mxu0 0
          %759 = vmatprep.subr.bf16.mxu0 0
          %760 = vmatpush1.bf16.msra.mxu0 0
          %761 = vmatprep.subr.bf16.mxu0 0
          %762 = vmatpush1.bf16.msra.mxu0 0
          %763 = vmatprep.subr.bf16.mxu0 0
          %764 = vmatpush1.bf16.msra.mxu0 0
          %765 = vmatprep.subr.bf16.mxu0 0
          %766 = vmatpush1.bf16.msra.mxu0 0
          %767 = vmatprep.subr.bf16.mxu0 0
          %768 = vmatpush1.bf16.msra.mxu0 0
          %769 = vmatprep.subr.bf16.mxu0 0
          %770 = vmatpush1.bf16.msra.mxu0 0
          %771 = vmatprep.subr.bf16.mxu0 0
          %772 = vmatpush1.bf16.msra.mxu0 0
          %773 = vmatprep.subr.bf16.mxu0 0
          %774 = vmatpush1.bf16.msra.mxu0 0
          %775 = vmatprep.subr.bf16.mxu0 0
          %776 = vmatpush1.bf16.msra.mxu0 0
          %777 = vmatprep.mubr.bf16.mxu0 0
          %778 = vmatmul.mubr.bf16.gmra.mrb[0].mxu0 %v739
          %v779 = vpop.f32.mrb[0].mxu0
          %v780 = vadd.f32 0.0, %v779
          %v781 = vpop.f32.mrb[0].mxu0
          %v782 = vpop.f32.mrb[0].mxu0
          %v783 = vpop.f32.mrb[0].mxu0
          %784 = vdwg.mxu0
          %vm785 = vcmask 261120
          %786 = vst.msk [vmem:[#allocation2] sm:$0xff] %vm785, %v780
        $region88: #{tpu_custom_call.1} parent=83 // pred_fallthru
          _
        %v787 = vld [vmem:[#allocation2] sm:$0xff]
        %v788 = vld [vmem:[%s679] sm:$0x1]
        %v789 = vld [vmem:[%s682] sm:$0x1]
        %vm790 = vcmask 261120
        %v791 = vsel %vm790, %v787, 0.0
        %792 = vadd.xlane.f32.xlu0 %v791
        %v793 = vpop.xlane.xlu0 %792
        %v794 = vrcp.pop 32.0
        %v795 = vmul.f32 %v793, %v794
        %v796 = vsub.f32 %v787, %v795
        %v797 = vmul.f32 %v796, %v796
        %v798 = vsel %vm790, %v797, 0.0
        %799 = vadd.xlane.f32.xlu0 %v798
        %v800 = vpop.xlane.xlu0 %799
        %v801 = vmul.f32 %v800, %v794
        %v802 = vadd.f32 %v801, 1e-05
        %v803 = vrsqrt.pop %v802
        %v804 = vmul.f32 %v796, %v803
        %v806 = vlaneseq
        %v807 = vshrl.u32 %v806, 7
        %v808 = vsub.s32 0, %v807
        %v809 = vrot.slane %v788, %v808
        %v811 = vmul.f32 %v804, %v809
        %v813 = vlaneseq
        %v814 = vshrl.u32 %v813, 7
        %v815 = vsub.s32 0, %v814
        %v816 = vrot.slane %v789, %v815
        %v818 = vadd.f32 %v811, %v816
        %v819 = vld [vmem:[%s687] sm:$0xf]
        %v820 = vld [vmem:[%s687 + $0x4] sm:$0xf]
        %v821 = vld [vmem:[%s687 + $0x8] sm:$0xf]
        %v822 = vld [vmem:[%s687 + $0xc] sm:$0xf]
        %v823 = vpack.c.bf16 %v818, %v818
        %v824 = vld [vmem:[%s690] sm:$0x1]
        %v826 = vlaneseq
        %v827 = vshrl.u32 %v826, 7
        %v828 = vsub.s32 0, %v827
        %v829 = vrot.slane %v824, %v828
        %v835 = vunpack.c.l.b16 %v819
        %v836 = vunpack.c.l.b16 %v820
        %v837 = vunpack.c.l.b16 %v821
        %v838 = vunpack.c.l.b16 %v822
        %v839 = vpack.c.b16 %v836, %v835
        %v840 = vpack.c.b16 %v838, %v837
        %v844 = vsel %vm790, %v823, 0
        %846 = vmatprep.subr.bf16.mxu0 0
        %847 = vmatpush1.bf16.msra.mxu0 %v839
        %848 = vmatprep.subr.bf16.mxu0 0
        %849 = vmatpush1.bf16.msra.mxu0 %v840
        %850 = vmatprep.subr.bf16.mxu0 0
        %851 = vmatpush1.bf16.msra.mxu0 0
        %852 = vmatprep.subr.bf16.mxu0 0
        %853 = vmatpush1.bf16.msra.mxu0 0
        %854 = vmatprep.subr.bf16.mxu0 0
        %855 = vmatpush1.bf16.msra.mxu0 0
        %856 = vmatprep.subr.bf16.mxu0 0
        %857 = vmatpush1.bf16.msra.mxu0 0
        %858 = vmatprep.subr.bf16.mxu0 0
        %859 = vmatpush1.bf16.msra.mxu0 0
        %860 = vmatprep.subr.bf16.mxu0 0
        %861 = vmatpush1.bf16.msra.mxu0 0
        %862 = vmatprep.subr.bf16.mxu0 0
        %863 = vmatpush1.bf16.msra.mxu0 0
        %864 = vmatprep.subr.bf16.mxu0 0
        %865 = vmatpush1.bf16.msra.mxu0 0
        %866 = vmatprep.subr.bf16.mxu0 0
        %867 = vmatpush1.bf16.msra.mxu0 0
        %868 = vmatprep.subr.bf16.mxu0 0
        %869 = vmatpush1.bf16.msra.mxu0 0
        %870 = vmatprep.subr.bf16.mxu0 0
        %871 = vmatpush1.bf16.msra.mxu0 0
        %872 = vmatprep.subr.bf16.mxu0 0
        %873 = vmatpush1.bf16.msra.mxu0 0
        %874 = vmatprep.subr.bf16.mxu0 0
        %875 = vmatpush1.bf16.msra.mxu0 0
        %876 = vmatprep.subr.bf16.mxu0 0
        %877 = vmatpush1.bf16.msra.mxu0 0
        %878 = vmatprep.mubr.bf16.mxu0 0
        %879 = vmatmul.mubr.bf16.gmra.mrb[0].mxu0 %v844
        %v880 = vpop.f32.mrb[0].mxu0
        %v881 = vadd.f32 %v829, %v880
        %v882 = vpop.f32.mrb[0].mxu0
        %v883 = vpop.f32.mrb[0].mxu0
        %v884 = vpop.f32.mrb[0].mxu0
        %885 = vdwg.mxu0
        %vm886 = vcmask 785408
        %887 = vst.msk [vmem:[#allocation3] sm:$0xff] %vm886, %v881
        %v888 = vld [vmem:[#allocation3] sm:$0xff]
        %890 = vrot.lane.b32.xlu0 %v888, 112
        %v891 = vpop.permute.xlu0 %890
        %v893 = vpack.c.bf16 %v888, %v888
        %v894 = vpack.c.bf16 %v891, %v891
        %896 = vrot.lane.b32.xlu0 %v893, 96
        %v897 = vpop.permute.xlu0 %896
        %vm898 = vcmask 130048
        %v900 = vsel %vm898, %v893, 0
        %v903 = vsel %vm898, %v897, 0
        %905 = vmatprep.subr.bf16.mxu0 0
        %906 = vmatpush1.bf16.xpose.msra.mxu0 %v903
        %907 = vmatprep.subr.bf16.mxu0 0
        %908 = vmatpush1.bf16.xpose.msra.mxu0 0
        %909 = vmatprep.subr.bf16.mxu0 0
        %910 = vmatpush1.bf16.xpose.msra.mxu0 0
        %911 = vmatprep.subr.bf16.mxu0 0
        %912 = vmatpush1.bf16.xpose.msra.mxu0 0
        %913 = vmatprep.subr.bf16.mxu0 0
        %914 = vmatpush1.bf16.xpose.msra.mxu0 0
        %915 = vmatprep.subr.bf16.mxu0 0
        %916 = vmatpush1.bf16.xpose.msra.mxu0 0
        %917 = vmatprep.subr.bf16.mxu0 0
        %918 = vmatpush1.bf16.xpose.msra.mxu0 0
        %919 = vmatprep.subr.bf16.mxu0 0
        %920 = vmatpush1.bf16.xpose.msra.mxu0 0
        %921 = vmatprep.subr.bf16.mxu0 0
        %922 = vmatpush1.bf16.xpose.msra.mxu0 0
        %923 = vmatprep.subr.bf16.mxu0 0
        %924 = vmatpush1.bf16.xpose.msra.mxu0 0
        %925 = vmatprep.subr.bf16.mxu0 0
        %926 = vmatpush1.bf16.xpose.msra.mxu0 0
        %927 = vmatprep.subr.bf16.mxu0 0
        %928 = vmatpush1.bf16.xpose.msra.mxu0 0
        %929 = vmatprep.subr.bf16.mxu0 0
        %930 = vmatpush1.bf16.xpose.msra.mxu0 0
        %931 = vmatprep.subr.bf16.mxu0 0
        %932 = vmatpush1.bf16.xpose.msra.mxu0 0
        %933 = vmatprep.subr.bf16.mxu0 0
        %934 = vmatpush1.bf16.xpose.msra.mxu0 0
        %935 = vmatprep.subr.bf16.mxu0 0
        %936 = vmatpush1.bf16.xpose.msra.mxu0 0
        %937 = vmatprep.mubr.bf16.mxu0 0
        %938 = vmatmul.mubr.bf16.gmra.mrb[0].mxu0 %v900
        %v939 = vpop.f32.mrb[0].mxu0
        %v940 = vadd.f32 0.0, %v939
        %v941 = vpop.f32.mrb[0].mxu0
        %v942 = vpop.f32.mrb[0].mxu0
        %v943 = vpop.f32.mrb[0].mxu0
        %944 = vdwg.mxu0
        %946 = vrot.lane.b32.xlu0 %v894, 96
        %v947 = vpop.permute.xlu0 %946
        %v949 = vsel %vm898, %v894, 0
        %v952 = vsel %vm898, %v947, 0
        %954 = vmatprep.subr.bf16.mxu0 0
        %955 = vmatpush1.bf16.xpose.msra.mxu0 %v952
        %956 = vmatprep.subr.bf16.mxu0 0
        %957 = vmatpush1.bf16.xpose.msra.mxu0 0
        %958 = vmatprep.subr.bf16.mxu0 0
        %959 = vmatpush1.bf16.xpose.msra.mxu0 0
        %960 = vmatprep.subr.bf16.mxu0 0
        %961 = vmatpush1.bf16.xpose.msra.mxu0 0
        %962 = vmatprep.subr.bf16.mxu0 0
        %963 = vmatpush1.bf16.xpose.msra.mxu0 0
        %964 = vmatprep.subr.bf16.mxu0 0
        %965 = vmatpush1.bf16.xpose.msra.mxu0 0
        %966 = vmatprep.subr.bf16.mxu0 0
        %967 = vmatpush1.bf16.xpose.msra.mxu0 0
        %968 = vmatprep.subr.bf16.mxu0 0
        %969 = vmatpush1.bf16.xpose.msra.mxu0 0
        %970 = vmatprep.subr.bf16.mxu0 0
        %971 = vmatpush1.bf16.xpose.msra.mxu0 0
        %972 = vmatprep.subr.bf16.mxu0 0
        %973 = vmatpush1.bf16.xpose.msra.mxu0 0
        %974 = vmatprep.subr.bf16.mxu0 0
        %975 = vmatpush1.bf16.xpose.msra.mxu0 0
        %976 = vmatprep.subr.bf16.mxu0 0
        %977 = vmatpush1.bf16.xpose.msra.mxu0 0
        %978 = vmatprep.subr.bf16.mxu0 0
        %979 = vmatpush1.bf16.xpose.msra.mxu0 0
        %980 = vmatprep.subr.bf16.mxu0 0
        %981 = vmatpush1.bf16.xpose.msra.mxu0 0
        %982 = vmatprep.subr.bf16.mxu0 0
        %983 = vmatpush1.bf16.xpose.msra.mxu0 0
        %984 = vmatprep.subr.bf16.mxu0 0
        %985 = vmatpush1.bf16.xpose.msra.mxu0 0
        %986 = vmatprep.mubr.bf16.mxu0 0
        %987 = vmatmul.mubr.bf16.gmra.mrb[0].mxu0 %v949
        %v988 = vpop.f32.mrb[0].mxu0
        %v989 = vadd.f32 0.0, %v988
        %v990 = vpop.f32.mrb[0].mxu0
        %v991 = vpop.f32.mrb[0].mxu0
        %v992 = vpop.f32.mrb[0].mxu0
        %993 = vdwg.mxu0
        %v994 = vmul.f32 %v940, 0.25
        %v995 = vmul.f32 %v989, 0.25
        %vm996 = vcmask 64512
        %v997 = vsel %vm996, %v994, -inf
        %998 = vmax.xlane.f32.xlu0 %v997
        %v999 = vpop.xlane.xlu0 %998
        %v1000 = vsel %vm996, %v995, -inf
        %1001 = vmax.xlane.f32.xlu0 %v1000
        %v1002 = vpop.xlane.xlu0 %1001
        %v1003 = vsub.f32 %v994, %v999
        %v1004 = vsub.f32 %v995, %v1002
        %v1005 = vmul.f32 %v1003, 1.442695
        %v1006 = vpow.pop %v1005
        %v1007 = vmul.f32 %v1004, 1.442695
        %v1008 = vpow.pop %v1007
        %v1009 = vsel %vm996, %v1006, 0.0
        %1010 = vadd.xlane.f32.xlu0 %v1009
        %v1011 = vpop.xlane.xlu0 %1010
        %v1012 = vsel %vm996, %v1008, 0.0
        %1013 = vadd.xlane.f32.xlu0 %v1012
        %v1014 = vpop.xlane.xlu0 %1013
        %v1015 = vrcp.pop %v1011
        %v1016 = vrcp.pop %v1014
        %v1017 = vmul.f32 %v1006, %v1015
        %v1018 = vmul.f32 %v1008, %v1016
        %v1019 = vpack.c.bf16 %v1017, %v1017
        %v1020 = vpack.c.bf16 %v1018, %v1018
        %1021 = vrot.lane.b32.xlu0 %v893, 64
        %v1022 = vpop.permute.xlu0 %1021
        %v1024 = vsel %vm996, %v1019, 0
        %vm1026 = vcmask 1043456
        %v1028 = vsel %vm1026, %v1022, 0
        %1030 = vmatprep.subr.bf16.mxu0 0
        %1031 = vmatpush1.bf16.msra.mxu0 %v1028
        %1032 = vmatprep.subr.bf16.mxu0 0
        %1033 = vmatpush1.bf16.msra.mxu0 0
        %1034 = vmatprep.subr.bf16.mxu0 0
        %1035 = vmatpush1.bf16.msra.mxu0 0
        %1036 = vmatprep.subr.bf16.mxu0 0
        %1037 = vmatpush1.bf16.msra.mxu0 0
        %1038 = vmatprep.subr.bf16.mxu0 0
        %1039 = vmatpush1.bf16.msra.mxu0 0
        %1040 = vmatprep.subr.bf16.mxu0 0
        %1041 = vmatpush1.bf16.msra.mxu0 0
        %1042 = vmatprep.subr.bf16.mxu0 0
        %1043 = vmatpush1.bf16.msra.mxu0 0
        %1044 = vmatprep.subr.bf16.mxu0 0
        %1045 = vmatpush1.bf16.msra.mxu0 0
        %1046 = vmatprep.subr.bf16.mxu0 0
        %1047 = vmatpush1.bf16.msra.mxu0 0
        %1048 = vmatprep.subr.bf16.mxu0 0
        %1049 = vmatpush1.bf16.msra.mxu0 0
        %1050 = vmatprep.subr.bf16.mxu0 0
        %1051 = vmatpush1.bf16.msra.mxu0 0
        %1052 = vmatprep.subr.bf16.mxu0 0
        %1053 = vmatpush1.bf16.msra.mxu0 0
        %1054 = vmatprep.subr.bf16.mxu0 0
        %1055 = vmatpush1.bf16.msra.mxu0 0
        %1056 = vmatprep.subr.bf16.mxu0 0
        %1057 = vmatpush1.bf16.msra.mxu0 0
        %1058 = vmatprep.subr.bf16.mxu0 0
        %1059 = vmatpush1.bf16.msra.mxu0 0
        %1060 = vmatprep.subr.bf16.mxu0 0
        %1061 = vmatpush1.bf16.msra.mxu0 0
        %1062 = vmatprep.mubr.bf16.mxu0 0
        %1063 = vmatmul.mubr.bf16.gmra.mrb[0].mxu0 %v1024
        %v1064 = vpop.f32.mrb[0].mxu0
        %v1065 = vadd.f32 0.0, %v1064
        %v1066 = vpop.f32.mrb[0].mxu0
        %v1067 = vpop.f32.mrb[0].mxu0
        %v1068 = vpop.f32.mrb[0].mxu0
        %1069 = vdwg.mxu0
        %1070 = vrot.lane.b32.xlu0 %v894, 64
        %v1071 = vpop.permute.xlu0 %1070
        %v1073 = vsel %vm996, %v1020, 0
        %v1076 = vsel %vm1026, %v1071, 0
        %1078 = vmatprep.subr.bf16.mxu0 0
        %1079 = vmatpush1.bf16.msra.mxu0 %v1076
        %1080 = vmatprep.subr.bf16.mxu0 0
        %1081 = vmatpush1.bf16.msra.mxu0 0
        %1082 = vmatprep.subr.bf16.mxu0 0
        %1083 = vmatpush1.bf16.msra.mxu0 0
        %1084 = vmatprep.subr.bf16.mxu0 0
        %1085 = vmatpush1.bf16.msra.mxu0 0
        %1086 = vmatprep.subr.bf16.mxu0 0
        %1087 = vmatpush1.bf16.msra.mxu0 0
        %1088 = vmatprep.subr.bf16.mxu0 0
        %1089 = vmatpush1.bf16.msra.mxu0 0
        %1090 = vmatprep.subr.bf16.mxu0 0
        %1091 = vmatpush1.bf16.msra.mxu0 0
        %1092 = vmatprep.subr.bf16.mxu0 0
        %1093 = vmatpush1.bf16.msra.mxu0 0
        %1094 = vmatprep.subr.bf16.mxu0 0
        %1095 = vmatpush1.bf16.msra.mxu0 0
        %1096 = vmatprep.subr.bf16.mxu0 0
        %1097 = vmatpush1.bf16.msra.mxu0 0
        %1098 = vmatprep.subr.bf16.mxu0 0
        %1099 = vmatpush1.bf16.msra.mxu0 0
        %1100 = vmatprep.subr.bf16.mxu0 0
        %1101 = vmatpush1.bf16.msra.mxu0 0
        %1102 = vmatprep.subr.bf16.mxu0 0
        %1103 = vmatpush1.bf16.msra.mxu0 0
        %1104 = vmatprep.subr.bf16.mxu0 0
        %1105 = vmatpush1.bf16.msra.mxu0 0
        %1106 = vmatprep.subr.bf16.mxu0 0
        %1107 = vmatpush1.bf16.msra.mxu0 0
        %1108 = vmatprep.subr.bf16.mxu0 0
        %1109 = vmatpush1.bf16.msra.mxu0 0
        %1110 = vmatprep.mubr.bf16.mxu0 0
        %1111 = vmatmul.mubr.bf16.gmra.mrb[0].mxu0 %v1073
        %v1112 = vpop.f32.mrb[0].mxu0
        %v1113 = vadd.f32 0.0, %v1112
        %v1114 = vpop.f32.mrb[0].mxu0
        %v1115 = vpop.f32.mrb[0].mxu0
        %v1116 = vpop.f32.mrb[0].mxu0
        %1117 = vdwg.mxu0
        %1118 = vst.msk [vmem:[#allocation4] sm:$0xff] %vm898, %v1065
        %1120 = vrot.lane.b32.xlu0 %v1113, 16
        %v1121 = vpop.permute.xlu0 %1120
        %vm1123 = vcmask 261248
        %1124 = vst.msk [vmem:[#allocation4] sm:$0xff] %vm1123, %v1121
        %v1125 = vld [vmem:[#allocation4] sm:$0xff]
        %v1126 = vld [vmem:[%s695] sm:$0xf]
        %v1127 = vld [vmem:[%s695 + $0x4] sm:$0xf]
        %v1128 = vld [vmem:[%s695 + $0x8] sm:$0xf]
        %v1129 = vld [vmem:[%s695 + $0xc] sm:$0xf]
        %v1130 = vpack.c.bf16 %v1125, %v1125
        %v1135 = vunpack.c.l.b16 %v1126
        %v1136 = vunpack.c.l.b16 %v1127
        %v1137 = vunpack.c.l.b16 %v1128
        %v1138 = vunpack.c.l.b16 %v1129
        %v1139 = vpack.c.b16 %v1136, %v1135
        %v1140 = vpack.c.b16 %v1138, %v1137
        %v1144 = vsel %vm790, %v1130, 0
        %1146 = vmatprep.subr.bf16.mxu0 0
        %1147 = vmatpush1.bf16.msra.mxu0 %v1139
        %1148 = vmatprep.subr.bf16.mxu0 0
        %1149 = vmatpush1.bf16.msra.mxu0 %v1140
        %1150 = vmatprep.subr.bf16.mxu0 0
        %1151 = vmatpush1.bf16.msra.mxu0 0
        %1152 = vmatprep.subr.bf16.mxu0 0
        %1153 = vmatpush1.bf16.msra.mxu0 0
        %1154 = vmatprep.subr.bf16.mxu0 0
        %1155 = vmatpush1.bf16.msra.mxu0 0
        %1156 = vmatprep.subr.bf16.mxu0 0
        %1157 = vmatpush1.bf16.msra.mxu0 0
        %1158 = vmatprep.subr.bf16.mxu0 0
        %1159 = vmatpush1.bf16.msra.mxu0 0
        %1160 = vmatprep.subr.bf16.mxu0 0
        %1161 = vmatpush1.bf16.msra.mxu0 0
        %1162 = vmatprep.subr.bf16.mxu0 0
        %1163 = vmatpush1.bf16.msra.mxu0 0
        %1164 = vmatprep.subr.bf16.mxu0 0
        %1165 = vmatpush1.bf16.msra.mxu0 0
        %1166 = vmatprep.subr.bf16.mxu0 0
        %1167 = vmatpush1.bf16.msra.mxu0 0
        %1168 = vmatprep.subr.bf16.mxu0 0
        %1169 = vmatpush1.bf16.msra.mxu0 0
        %1170 = vmatprep.subr.bf16.mxu0 0
        %1171 = vmatpush1.bf16.msra.mxu0 0
        %1172 = vmatprep.subr.bf16.mxu0 0
        %1173 = vmatpush1.bf16.msra.mxu0 0
        %1174 = vmatprep.subr.bf16.mxu0 0
        %1175 = vmatpush1.bf16.msra.mxu0 0
        %1176 = vmatprep.subr.bf16.mxu0 0
        %1177 = vmatpush1.bf16.msra.mxu0 0
        %1178 = vmatprep.mubr.bf16.mxu0 0
        %1179 = vmatmul.mubr.bf16.gmra.mrb[0].mxu0 %v1144
        %v1180 = vpop.f32.mrb[0].mxu0
        %v1181 = vadd.f32 0.0, %v1180
        %v1182 = vpop.f32.mrb[0].mxu0
        %v1183 = vpop.f32.mrb[0].mxu0
        %v1184 = vpop.f32.mrb[0].mxu0
        %1185 = vdwg.mxu0
        %v1186 = vadd.f32 %v787, %v1181
        %v1187 = vld [vmem:[%s698] sm:$0x1]
        %v1189 = vlaneseq
        %v1190 = vshrl.u32 %v1189, 7
        %v1191 = vsub.s32 0, %v1190
        %v1192 = vrot.slane %v1187, %v1191
        %v1194 = vadd.f32 %v1186, %v1192
        %v1195 = vld [vmem:[%s701] sm:$0x1]
        %v1196 = vld [vmem:[%s704] sm:$0x1]
        %v1197 = vsel %vm790, %v1194, 0.0
        %1198 = vadd.xlane.f32.xlu0 %v1197
        %v1199 = vpop.xlane.xlu0 %1198
        %v1200 = vmul.f32 %v1199, %v794
        %v1201 = vsub.f32 %v1194, %v1200
        %v1202 = vmul.f32 %v1201, %v1201
        %v1203 = vsel %vm790, %v1202, 0.0
        %1204 = vadd.xlane.f32.xlu0 %v1203
        %v1205 = vpop.xlane.xlu0 %1204
        %v1206 = vmul.f32 %v1205, %v794
        %v1207 = vadd.f32 %v1206, 1e-05
        %v1208 = vrsqrt.pop %v1207
        %v1209 = vmul.f32 %v1201, %v1208
        %v1211 = vlaneseq
        %v1212 = vshrl.u32 %v1211, 7
        %v1213 = vsub.s32 0, %v1212
        %v1214 = vrot.slane %v1195, %v1213
        %v1216 = vmul.f32 %v1209, %v1214
        %v1218 = vlaneseq
        %v1219 = vshrl.u32 %v1218, 7
        %v1220 = vsub.s32 0, %v1219
        %v1221 = vrot.slane %v1196, %v1220
        %v1223 = vadd.f32 %v1216, %v1221
        %v1224 = vld [vmem:[%s709] sm:$0xf]
        %v1225 = vld [vmem:[%s709 + $0x4] sm:$0xf]
        %v1226 = vld [vmem:[%s709 + $0x8] sm:$0xf]
        %v1227 = vld [vmem:[%s709 + $0xc] sm:$0xf]
        %v1228 = vpack.c.bf16 %v1223, %v1223
        %v1229 = vld [vmem:[%s712] sm:$0x1]
        %v1231 = vlaneseq
        %v1232 = vshrl.u32 %v1231, 7
        %v1233 = vsub.s32 0, %v1232
        %v1234 = vrot.slane %v1229, %v1233
        %v1240 = vunpack.c.l.b16 %v1224
        %v1241 = vunpack.c.l.b16 %v1225
        %v1242 = vunpack.c.l.b16 %v1226
        %v1243 = vunpack.c.l.b16 %v1227
        %v1244 = vpack.c.b16 %v1241, %v1240
        %v1245 = vpack.c.b16 %v1243, %v1242
        %v1249 = vsel %vm790, %v1228, 0
        %1251 = vmatprep.subr.bf16.mxu0 0
        %1252 = vmatpush1.bf16.msra.mxu0 %v1244
        %1253 = vmatprep.subr.bf16.mxu0 0
        %1254 = vmatpush1.bf16.msra.mxu0 %v1245
        %1255 = vmatprep.subr.bf16.mxu0 0
        %1256 = vmatpush1.bf16.msra.mxu0 0
        %1257 = vmatprep.subr.bf16.mxu0 0
        %1258 = vmatpush1.bf16.msra.mxu0 0
        %1259 = vmatprep.subr.bf16.mxu0 0
        %1260 = vmatpush1.bf16.msra.mxu0 0
        %1261 = vmatprep.subr.bf16.mxu0 0
        %1262 = vmatpush1.bf16.msra.mxu0 0
        %1263 = vmatprep.subr.bf16.mxu0 0
        %1264 = vmatpush1.bf16.msra.mxu0 0
        %1265 = vmatprep.subr.bf16.mxu0 0
        %1266 = vmatpush1.bf16.msra.mxu0 0
        %1267 = vmatprep.subr.bf16.mxu0 0
        %1268 = vmatpush1.bf16.msra.mxu0 0
        %1269 = vmatprep.subr.bf16.mxu0 0
        %1270 = vmatpush1.bf16.msra.mxu0 0
        %1271 = vmatprep.subr.bf16.mxu0 0
        %1272 = vmatpush1.bf16.msra.mxu0 0
        %1273 = vmatprep.subr.bf16.mxu0 0
        %1274 = vmatpush1.bf16.msra.mxu0 0
        %1275 = vmatprep.subr.bf16.mxu0 0
        %1276 = vmatpush1.bf16.msra.mxu0 0
        %1277 = vmatprep.subr.bf16.mxu0 0
        %1278 = vmatpush1.bf16.msra.mxu0 0
        %1279 = vmatprep.subr.bf16.mxu0 0
        %1280 = vmatpush1.bf16.msra.mxu0 0
        %1281 = vmatprep.subr.bf16.mxu0 0
        %1282 = vmatpush1.bf16.msra.mxu0 0
        %1283 = vmatprep.mubr.bf16.mxu0 0
        %1284 = vmatmul.mubr.bf16.gmra.mrb[0].mxu0 %v1249
        %v1285 = vpop.f32.mrb[0].mxu0
        %v1286 = vadd.f32 %v1234, %v1285
        %v1287 = vpop.f32.mrb[0].mxu0
        %v1288 = vpop.f32.mrb[0].mxu0
        %v1289 = vpop.f32.mrb[0].mxu0
        %1290 = vdwg.mxu0
        %v1291 = vmul.f32 %v1286, 0.5
        %v1292 = vmul.f32 %v1286, 0.044715
        %v1293 = vmul.f32 %v1292, %v1286
        %v1294 = vmul.f32 %v1293, %v1286
        %v1295 = vadd.f32 %v1286, %v1294
        %v1296 = vmul.f32 %v1295, 0.7978846
        %v1297 = vtanh.pop %v1296
        %v1298 = vadd.f32 %v1297, 1.0
        %v1299 = vmul.f32 %v1291, %v1298
        %v1300 = vld [vmem:[%s717] sm:$0xf]
        %v1301 = vld [vmem:[%s717 + $0x4] sm:$0xf]
        %v1302 = vld [vmem:[%s717 + $0x8] sm:$0xf]
        %v1303 = vld [vmem:[%s717 + $0xc] sm:$0xf]
        %v1304 = vld [vmem:[%s717 + $0x10] sm:$0xf]
        %v1305 = vld [vmem:[%s717 + $0x14] sm:$0xf]
        %v1306 = vld [vmem:[%s717 + $0x18] sm:$0xf]
        %v1307 = vld [vmem:[%s717 + $0x1c] sm:$0xf]
        %v1308 = vld [vmem:[%s717 + $0x20] sm:$0xf]
        %v1309 = vld [vmem:[%s717 + $0x24] sm:$0xf]
        %v1310 = vld [vmem:[%s717 + $0x28] sm:$0xf]
        %v1311 = vld [vmem:[%s717 + $0x2c] sm:$0xf]
        %v1312 = vld [vmem:[%s717 + $0x30] sm:$0xf]
        %v1313 = vld [vmem:[%s717 + $0x34] sm:$0xf]
        %v1314 = vld [vmem:[%s717 + $0x38] sm:$0xf]
        %v1315 = vld [vmem:[%s717 + $0x3c] sm:$0xf]
        %v1316 = vpack.c.bf16 %v1299, %v1299
        %v1333 = vunpack.c.l.b16 %v1300
        %v1334 = vunpack.c.l.b16 %v1301
        %v1335 = vunpack.c.l.b16 %v1302
        %v1336 = vunpack.c.l.b16 %v1303
        %v1337 = vunpack.c.l.b16 %v1304
        %v1338 = vunpack.c.l.b16 %v1305
        %v1339 = vunpack.c.l.b16 %v1306
        %v1340 = vunpack.c.l.b16 %v1307
        %v1341 = vunpack.c.l.b16 %v1308
        %v1342 = vunpack.c.l.b16 %v1309
        %v1343 = vunpack.c.l.b16 %v1310
        %v1344 = vunpack.c.l.b16 %v1311
        %v1345 = vunpack.c.l.b16 %v1312
        %v1346 = vunpack.c.l.b16 %v1313
        %v1347 = vunpack.c.l.b16 %v1314
        %v1348 = vunpack.c.l.b16 %v1315
        %v1349 = vpack.c.b16 %v1334, %v1333
        %v1350 = vpack.c.b16 %v1336, %v1335
        %v1351 = vpack.c.b16 %v1338, %v1337
        %v1352 = vpack.c.b16 %v1340, %v1339
        %v1353 = vpack.c.b16 %v1342, %v1341
        %v1354 = vpack.c.b16 %v1344, %v1343
        %v1355 = vpack.c.b16 %v1346, %v1345
        %v1356 = vpack.c.b16 %v1348, %v1347
        %1365 = vmatprep.subr.bf16.mxu0 0
        %1366 = vmatpush1.bf16.msra.mxu0 %v1349
        %1367 = vmatprep.subr.bf16.mxu0 0
        %1368 = vmatpush1.bf16.msra.mxu0 %v1350
        %1369 = vmatprep.subr.bf16.mxu0 0
        %1370 = vmatpush1.bf16.msra.mxu0 %v1351
        %1371 = vmatprep.subr.bf16.mxu0 0
        %1372 = vmatpush1.bf16.msra.mxu0 %v1352
        %1373 = vmatprep.subr.bf16.mxu0 0
        %1374 = vmatpush1.bf16.msra.mxu0 %v1353
        %1375 = vmatprep.subr.bf16.mxu0 0
        %1376 = vmatpush1.bf16.msra.mxu0 %v1354
        %1377 = vmatprep.subr.bf16.mxu0 0
        %1378 = vmatpush1.bf16.msra.mxu0 %v1355
        %1379 = vmatprep.subr.bf16.mxu0 0
        %1380 = vmatpush1.bf16.msra.mxu0 %v1356
        %1381 = vmatprep.subr.bf16.mxu0 0
        %1382 = vmatpush1.bf16.msra.mxu0 0
        %1383 = vmatprep.subr.bf16.mxu0 0
        %1384 = vmatpush1.bf16.msra.mxu0 0
        %1385 = vmatprep.subr.bf16.mxu0 0
        %1386 = vmatpush1.bf16.msra.mxu0 0
        %1387 = vmatprep.subr.bf16.mxu0 0
        %1388 = vmatpush1.bf16.msra.mxu0 0
        %1389 = vmatprep.subr.bf16.mxu0 0
        %1390 = vmatpush1.bf16.msra.mxu0 0
        %1391 = vmatprep.subr.bf16.mxu0 0
        %1392 = vmatpush1.bf16.msra.mxu0 0
        %1393 = vmatprep.subr.bf16.mxu0 0
        %1394 = vmatpush1.bf16.msra.mxu0 0
        %1395 = vmatprep.subr.bf16.mxu0 0
        %1396 = vmatpush1.bf16.msra.mxu0 0
        %1397 = vmatprep.mubr.bf16.mxu0 0
        %1398 = vmatmul.mubr.bf16.gmra.mrb[0].mxu0 %v1316
        %v1399 = vpop.f32.mrb[0].mxu0
        %v1400 = vadd.f32 0.0, %v1399
        %v1401 = vpop.f32.mrb[0].mxu0
        %v1402 = vpop.f32.mrb[0].mxu0
        %v1403 = vpop.f32.mrb[0].mxu0
        %1404 = vdwg.mxu0
        %v1405 = vadd.f32 %v1194, %v1400
        %v1406 = vld [vmem:[%s720] sm:$0x1]
        %v1408 = vlaneseq
        %v1409 = vshrl.u32 %v1408, 7
        %v1410 = vsub.s32 0, %v1409
        %v1411 = vrot.slane %v1406, %v1410
        %v1413 = vadd.f32 %v1405, %v1411
        %1414 = vst.msk [vmem:[#allocation2] sm:$0xff] %vm790, %v1413
        %p1415 = scmp.eq.s32.totalorder %s35, 1
        // Predicated region
        $region89: #{tpu_custom_call.1} parent=83 // pred_check
          %p1416 = pneg %p1415
        $region90: #{tpu_custom_call.1} parent=83 // pred_check_branch
          %1418 = sbr.rel (%p1416) target = $region92
        $region91: #{tpu_custom_call.1} parent=83 // pred_region
          %v1419 = vld [vmem:[%s14] sm:$0x1]
          %v1420 = vld [vmem:[%s15] sm:$0x1]
          %v1421 = vsel %vm790, %v1413, 0.0
          %1422 = vadd.xlane.f32.xlu0 %v1421
          %v1423 = vpop.xlane.xlu0 %1422
          %v1424 = vmul.f32 %v1423, %v794
          %v1425 = vsub.f32 %v1413, %v1424
          %v1426 = vmul.f32 %v1425, %v1425
          %v1427 = vsel %vm790, %v1426, 0.0
          %1428 = vadd.xlane.f32.xlu0 %v1427
          %v1429 = vpop.xlane.xlu0 %1428
          %v1430 = vmul.f32 %v1429, %v794
          %v1431 = vadd.f32 %v1430, 1e-05
          %v1432 = vrsqrt.pop %v1431
          %v1433 = vmul.f32 %v1425, %v1432
          %v1435 = vlaneseq
          %v1436 = vshrl.u32 %v1435, 7
          %v1437 = vsub.s32 0, %v1436
          %v1438 = vrot.slane %v1419, %v1437
          %v1440 = vmul.f32 %v1433, %v1438
          %v1442 = vlaneseq
          %v1443 = vshrl.u32 %v1442, 7
          %v1444 = vsub.s32 0, %v1443
          %v1445 = vrot.slane %v1420, %v1444
          %v1447 = vadd.f32 %v1440, %v1445
          %1448 = vst.msk [vmem:[%s672] sm:$0xff] %vm790, %v1447
        $region92: #{tpu_custom_call.1} parent=83 // pred_fallthru
          _
        %s1449 = sand.u32 %s451, 1
        %s1450 = scalar_lea.sflag [#allocation6], %s1449
        %s1451 = sand.u32 %s451, 1
        %s1452 = smul.addr %s1451, 8
        %s1453 = scalar_lea.vmem [#allocation5], %s1452
        // Predicated region
        $region93: #{tpu_custom_call.1} parent=83 // pred_check
          %p1454 = pneg %p461
        $region94: #{tpu_custom_call.1} parent=83 // pred_check_branch
          %1456 = sbr.rel (%p1454) target = $region96
        $region95: #{tpu_custom_call.1} parent=83 // pred_region
          %s1458 = ssub.s32 128, 128
          %1459 = vsyncadd %s1450, %s1458
          %s1460 = smul.addr %s34, 128
          %s1461 = scalar_lea.hbm %s16, %s1460
          %s1463 = sshll.u32 %s1453, 4
          %s1464 = int_to_ptr.vmem [resolvable:$true] %s1463
          %1466 = dma.vmem_to_hbm [thread:$0]  %s1464, 128, %s1461, %s1450
        $region96: #{tpu_custom_call.1} parent=83 // pred_fallthru
          _
      $region84: #{tpu_custom_call.1} parent=5 // pred_fallthru
        _
      %p1467 = scmp.le.s32.totalorder 2, %s25
      // Predicated region
      $region97: #{tpu_custom_call.1} parent=5 // pred_check
        %p1468 = pneg %p1467
      $region98: #{tpu_custom_call.1} parent=5 // pred_check_branch
        %1470 = sbr.rel (%p1468) target = $region100
      $region99: #{tpu_custom_call.1} parent=5 // pred_region
        %s1471 = ssub.s32 %s25, 2
        // Predicated region
        $region101: #{tpu_custom_call.1} parent=99 // pred_check
          %p1472 = pneg %p467
        $region102: #{tpu_custom_call.1} parent=99 // pred_check_branch
          %1474 = sbr.rel (%p1472) target = $region104
        $region103: #{tpu_custom_call.1} parent=99 // pred_region
          %s1475 = sand.u32 %s452, 1
          %s1476 = scalar_lea.sflag [#allocation6], %s1475
          %s1477 = sand.u32 %s452, 1
          %s1478 = smul.addr %s1477, 8
          %s1479 = scalar_lea.vmem [#allocation5], %s1478
          %1480 = dma.done %s1476, 128
        $region104: #{tpu_custom_call.1} parent=99 // pred_fallthru
          _
      $region100: #{tpu_custom_call.1} parent=5 // pred_fallthru
        _
    $region6: #{tpu_custom_call.1} parent=1 // loop_footer
      %s29 = sadd.s32 1, %s25
    $region7: #{tpu_custom_call.1} parent=1 // loop_footer_branch
      %24 = sbr.rel target = $region3
    $region8: #{tpu_custom_call.1} parent=1 // loop_exit
      _
    %1481 = vsyncpa [#allocation6], 1
    %s1482 = scalar_lea.sflag [#allocation6], 1
    %1483 = vsyncpa %s1482, 1

</llo_original>
